<compile_context>
chip_gen: v5e
topology: v5e:2x2
jax: 0.10.0
libtpu: 0.0.40
codegen_flags: <defaults>
</compile_context>

<pallas_src>
import functools

import jax
import jax.numpy as jnp
from jax import lax
from jax.experimental import pallas as pl
from jax.experimental.pallas import tpu as pltpu


_BN_EPS = 1e-5          # PyTorch BatchNorm2d default


def _vmem_limit_bytes():
    """Scoped-VMEM limit derived from the chip (v7x 64 MiB/TC vs 128 MiB v5e/v6e)."""
    try:
        cap = int(pltpu.get_tpu_info().vmem_capacity_bytes)
    except Exception:                     # conservative: assume smallest (v7x) budget
        cap = 64 * 1024 * 1024
    return max(16 * 1024 * 1024, min(cap // 2, 48 * 1024 * 1024))


# ------------------------------ fused Pallas kernel ------------------------------

def _make_fused_kernel(out_hw, batch, eps):
    """deconv+ReLU -> 3x3 conv+bias -> BatchNorm(batch stats) -> +bypass -> ReLU."""
    hw = out_hw * out_hw

    def kernel(p_ref, w1_ref, b1_ref, w2_ref, b2_ref, g_ref, bt_ref,
               byp_ref, mk_ref, o_ref):
        m = p_ref.shape[1]                                   # = batch * out_hw^2

        # --- stage 1: ConvTranspose2d as one block-structured sub-pixel matmul ---
        r = jnp.dot(w1_ref[...], p_ref[...], preferred_element_type=jnp.float32)
        r = jnp.maximum(r + b1_ref[...], 0.0)                # (c_out, M) f32, ReLU

        # --- stage 2: 3x3 conv; im2col via XLU lane rolls + hoisted host masks ---
        taps = []
        t = 0
        for dy in (-1, 0, 1):
            for dx in (-1, 0, 1):
                amt = (-(dy * out_hw + dx)) % m              # static shift
                sh = pltpu.roll(r, shift=amt, axis=1) if amt else r
                taps.append(sh * mk_ref[t:t + 1, :])         # zero invalid neighbors
                t += 1
        s_mat = jnp.concatenate(taps, axis=0).astype(jnp.bfloat16)   # (9*c_out, M)
        y = jnp.dot(w2_ref[...], s_mat, preferred_element_type=jnp.float32)
        y = y + b2_ref[...]                                  # (c_out, M) f32

        # --- stage 3: BatchNorm2d with batch statistics (centered variance) ---
        inv_m = 1.0 / m
        mean = jnp.sum(y, axis=1, keepdims=True) * inv_m
        d = y - mean
        var = jnp.sum(d * d, axis=1, keepdims=True) * inv_m
        scale = g_ref[...] * lax.rsqrt(var + eps)            # EUP rsqrt
        out = jnp.maximum(d * scale + bt_ref[...] + byp_ref[...], 0.0)

        # --- lane-dense NCHW-flat store: (batch, c_out, H*W) ---
        for n in range(batch):                               # static, tiny batch
            o_ref[n] = out[:, n * hw:(n + 1) * hw].astype(o_ref.dtype)

    return kernel


def _fused_pallas(p_full, w1, b1, w2, b2, gamma, beta, bypass, masks, *,
                  batch, out_hw, c_out):
    km, m = p_full.shape
    hw = out_hw * out_hw
    vmem_limit = _vmem_limit_bytes()

    # Whole-problem-in-VMEM fusion (single grid step): rough working-set guard.
    approx_vmem = m * (km * 2 + 9 * c_out * 6 + c_out * 24 + 9 * 4 + 16)
    assert approx_vmem < vmem_limit, (approx_vmem, vmem_limit)

    flops = 2 * c_out * km * m + 2 * c_out * (9 * c_out) * m + 14 * c_out * m
    bytes_acc = (p_full.size * 2 + w1.size * 2 + w2.size * 2 + masks.size * 4 +
                 bypass.size * 4 +
                 (b1.size + b2.size + gamma.size + beta.size) * 4 +
                 batch * c_out * hw * 4)

    return pl.pallas_call(
        _make_fused_kernel(out_hw, batch, _BN_EPS),
        out_shape=jax.ShapeDtypeStruct((batch, c_out, hw), jnp.float32),
        grid=(1,),
        in_specs=[
            pl.BlockSpec((km, m), lambda i: (0, 0)),             # deconv patches (bf16)
            pl.BlockSpec((c_out, km), lambda i: (0, 0)),         # deconv weights (bf16)
            pl.BlockSpec((c_out, 1), lambda i: (0, 0)),          # deconv bias
            pl.BlockSpec((c_out, 9 * c_out), lambda i: (0, 0)),  # conv weights (bf16)
            pl.BlockSpec((c_out, 1), lambda i: (0, 0)),          # conv bias
            pl.BlockSpec((c_out, 1), lambda i: (0, 0)),          # bn gamma
            pl.BlockSpec((c_out, 1), lambda i: (0, 0)),          # bn beta
            pl.BlockSpec((c_out, m), lambda i: (0, 0)),          # nearest bypass
            pl.BlockSpec((9, m), lambda i: (0, 0)),              # im2col masks
        ],
        out_specs=pl.BlockSpec((batch, c_out, hw), lambda i: (0, 0, 0)),
        compiler_params=pltpu.CompilerParams(
            dimension_semantics=("arbitrary",),
            vmem_limit_bytes=vmem_limit),
        cost_estimate=pl.CostEstimate(flops=int(flops), transcendentals=int(c_out),
                                      bytes_accessed=int(bytes_acc)),
    )(p_full, w1, b1, w2, b2, gamma, beta, bypass, masks)


# ------------------------------ host-side operand prep ------------------------------

def _build_deconv_operands(x, w_t, k, s, p, out_size):
    """Sub-pixel decomposition of ConvTranspose2d, block-structured along K.

    Returns
      P_full: (s^2*K1, M) with M = b*out^2; column (n, y, x) carries the K1 taps of
              its own phase (y%s, x%s) in row block q=(y%s)*s+(x%s), zeros elsewhere.
      W_all:  (c_out, s^2*K1) the per-phase weight matrices stacked along K.
    So W_all @ P_full is the deconv output directly in final (b, y, x) column order.
    """
    b, c, h, w = x.shape
    c_out = w_t.shape[1]
    kk = k // s
    s2 = s * s
    k1 = c * kk * kk
    oh2 = ow2 = out_size // s
    q_max = (s - 1 + p) // s
    pad_lo = max(0, (kk - 1) - p // s)
    pad_hi_r = max(0, (oh2 - 1) + q_max - (h - 1))
    pad_hi_c = max(0, (ow2 - 1) + q_max - (w - 1))
    xp = jnp.pad(x, ((0, 0), (0, 0), (pad_lo, pad_hi_r), (pad_lo, pad_hi_c)))

    patches, weights = [], []
    for py in range(s):
        ry, qy = (py + p) % s, (py + p) // s
        for px in range(s):
            rx, qx = (px + p) % s, (px + p) // s
            taps = []
            for mm in range(kk):
                top = qy - mm + pad_lo
                for nn in range(kk):
                    left = qx - nn + pad_lo
                    taps.append(xp[:, :, top:top + oh2, left:left + ow2])
            t = jnp.stack(taps, axis=0)                   # (kk*kk, b, c, oh2, ow2)
            t = t.transpose(2, 0, 1, 3, 4)                # (c, kk*kk, b, oh2, ow2)
            patches.append(t.reshape(k1, b * oh2 * ow2))
            w_sub = w_t[:, :, ry::s, rx::s]               # (c, c_out, kk, kk)
            weights.append(w_sub.transpose(1, 0, 2, 3).reshape(c_out, k1))

    p_phase = jnp.stack(patches, axis=0)                  # (s2, k1, m2)
    w_all = jnp.stack(weights, axis=0).transpose(1, 0, 2).reshape(c_out, s2 * k1)

    # Block-structured expansion + phase interleave of the COLUMNS (so the kernel
    # output needs no reshuffle): rows = (phase, k1), cols = (n, y, x).
    eye = jnp.eye(s2, dtype=p_phase.dtype)
    z = eye[:, :, None, None] * p_phase[None]             # (p, q, k1, m2)
    z = z.reshape(s2, s, s, k1, b, oh2, ow2)              # (p, py, px, k1, n, j, i)
    z = z.transpose(0, 3, 4, 5, 1, 6, 2)                  # (p, k1, n, j, py, i, px)
    p_full = z.reshape(s2 * k1, b * out_size * out_size)
    return p_full, w_all


def _build_conv_masks(out_size, batch):
    """(9, batch*out^2) f32 validity masks for the 3x3 im2col lane rolls."""
    pos = jnp.arange(out_size)
    rows = []
    for dy in (-1, 0, 1):
        vy = ((pos + dy >= 0) & (pos + dy < out_size)).astype(jnp.float32)
        for dx in (-1, 0, 1):
            vx = ((pos + dx >= 0) & (pos + dx < out_size)).astype(jnp.float32)
            rows.append((vy[:, None] * vx[None, :]).reshape(-1))
    mask = jnp.stack(rows, axis=0)                         # (9, out^2)
    return jnp.tile(mask, (1, batch))                      # columns ordered (n, y, x)


def _build_bypass(x, c_out, out_size):
    """Nearest 3-D interpolation of the augmented x (channels, H, W) -> (c_out, M).

    Matches F.interpolate(x.unsqueeze(1), size=(c_out, out, out), mode='nearest'):
    nearest across the channel axis + nearest spatial upsampling.
    """
    b, c_aug, h, w = x.shape
    ch_idx = [min((i * c_aug) // c_out, c_aug - 1) for i in range(c_out)]
    xg = x[:, jnp.asarray(ch_idx, dtype=jnp.int32)]        # (b, c_out, h, w)
    xg = xg.transpose(1, 0, 2, 3)                          # (c_out, b, h, w)
    if out_size % h == 0 and out_size % w == 0:
        sy, sx = out_size // h, out_size // w
        byp = jnp.broadcast_to(xg[:, :, :, None, :, None],
                               (c_out, b, h, sy, w, sx))
        byp = byp.reshape(c_out, b * out_size * out_size)
    else:
        ridx = jnp.minimum((jnp.arange(out_size) * h) // out_size, h - 1)
        cidx = jnp.minimum((jnp.arange(out_size) * w) // out_size, w - 1)
        byp = xg[:, :, ridx, :][:, :, :, cidx].reshape(c_out, b * out_size * out_size)
    return byp.astype(jnp.float32)


# ------------------------------ forward ------------------------------

def image_upsample_forward(x, params, config):
    """x: (b, in_channels, H, W) NCHW.  Returns NCHW (b, out_channels, out, out)."""
    b, _, h, w = x.shape
    k = config['kernel_size']
    s = config['stride']
    p = config['padding']
    op = config['out_padding']
    c_out = config['out_channels']
    out_size = config['out_size']
    assert k % s == 0 and out_size % s == 0
    assert out_size == (h - 1) * s - 2 * p + k + op
    assert out_size == (w - 1) * s - 2 * p + k + op

    # ---- coord-conv augmentation (tiny XLA glue, matches the reference) ----
    if config.get('cordconv', False):
        x_cord = 2.0 * (jnp.arange(w, dtype=jnp.float32) - (w - 1) / 2.0) / w
        y_cord = 2.0 * (jnp.arange(h, dtype=jnp.float32) - (h - 1) / 2.0) / h
        x_emb = jnp.broadcast_to(x_cord[None, :], (h, w))
        y_emb = jnp.broadcast_to(y_cord[:, None], (h, w))
        r_emb = jnp.sqrt(x_emb * x_emb + y_emb * y_emb)
        cord = jnp.broadcast_to(jnp.stack([x_emb, y_emb, r_emb], axis=0)[None],
                                (b, 3, h, w))
        x = jnp.concatenate([x, cord], axis=1)

    # ---- operand prep, then ONE fused pallas_call ----
    p_full, w1 = _build_deconv_operands(x, params['deconv_w'], k, s, p, out_size)
    p_full = p_full.astype(jnp.bfloat16)
    w1 = w1.astype(jnp.bfloat16)
    w2 = (params['conv_w'].transpose(0, 2, 3, 1)
          .reshape(c_out, 9 * c_out).astype(jnp.bfloat16))   # columns (tap, ci)
    masks = _build_conv_masks(out_size, b)
    bypass = _build_bypass(x, c_out, out_size)

    y = _fused_pallas(
        p_full, w1, params['deconv_b'][:, None].astype(jnp.float32),
        w2, params['conv_b'][:, None].astype(jnp.float32),
        params['bn_gamma'][:, None].astype(jnp.float32),
        params['bn_beta'][:, None].astype(jnp.float32),
        bypass, masks, batch=b, out_hw=out_size, c_out=c_out)

    # Dropout2d: identity at inference.  Final reshape is a free bitcast.
    return y.reshape(b, c_out, out_size, out_size)


# ------------------------------ parameter init ------------------------------

def init_params(key, config):
    c_in = config['in_channels'] + (3 if config.get('cordconv', False) else 0)
    c_out = config['out_channels']
    k = config['kernel_size']
    ks = jax.random.split(key, 6)
    return {
        'deconv_w': 0.1 * jax.random.normal(ks[0], (c_in, c_out, k, k), jnp.float32),
        'deconv_b': 0.1 * jax.random.normal(ks[1], (c_out,), jnp.float32),
        'conv_w':   0.1 * jax.random.normal(ks[2], (c_out, c_out, 3, 3), jnp.float32),
        'conv_b':   0.1 * jax.random.normal(ks[3], (c_out,), jnp.float32),
        'bn_gamma': 1.0 + 0.1 * jax.random.normal(ks[4], (c_out,), jnp.float32),
        'bn_beta':  0.1 * jax.random.normal(ks[5], (c_out,), jnp.float32),
    }


if __name__ == "__main__":
    config = {
        'in_channels': 4,
        'out_channels': 8,
        'kernel_size': 4,
        'stride': 2,
        'padding': 1,
        'out_padding': 0,
        'dropout': 0.1,
        'out_size': 32,
        'cordconv': True,
    }
    key = jax.random.PRNGKey(0)
    k_x, k_p = jax.random.split(key)
    x = jax.random.normal(k_x, (2, config['in_channels'], 16, 16), jnp.float32)  # NCHW
    params = init_params(k_p, config)

    fwd = jax.jit(functools.partial(image_upsample_forward, config=config))
    y = jax.block_until_ready(fwd(x, params))
    assert y.shape == (2, config['out_channels'], config['out_size'], config['out_size'])
    assert bool(jnp.all(jnp.isfinite(y)))
    print("KERNEL_OK")
</pallas_src>

<mosaic_0001>
module attributes {stable_mosaic.version = 11 : i64} {
  func.func @kernel(%arg0: i32, %arg1: memref<112x2048xbf16, #tpu.memory_space<vmem>>, %arg2: memref<8x112xbf16, #tpu.memory_space<vmem>>, %arg3: memref<8x1xf32, #tpu.memory_space<vmem>>, %arg4: memref<8x72xbf16, #tpu.memory_space<vmem>>, %arg5: memref<8x1xf32, #tpu.memory_space<vmem>>, %arg6: memref<8x1xf32, #tpu.memory_space<vmem>>, %arg7: memref<8x1xf32, #tpu.memory_space<vmem>>, %arg8: memref<8x2048xf32, #tpu.memory_space<vmem>>, %arg9: memref<9x2048xf32, #tpu.memory_space<vmem>>, %arg10: memref<2x8x1024xf32, #tpu.memory_space<vmem>>) attributes {dimension_semantics = [#tpu.dimension_semantics<arbitrary>], iteration_bounds = array<i64: 1>, scalar_prefetch = 0 : i64, scratch_operands = 0 : i64, tpu.core_type = #tpu.core_type<tc>, window_params = [{pipeline_mode = #tpu.pipeline_mode<synchronous>, transform_indices = @transform_0, window_bounds = array<i64: 112, 2048>}, {pipeline_mode = #tpu.pipeline_mode<synchronous>, transform_indices = @transform_1, window_bounds = array<i64: 8, 112>}, {pipeline_mode = #tpu.pipeline_mode<synchronous>, transform_indices = @transform_2, window_bounds = array<i64: 8, 1>}, {pipeline_mode = #tpu.pipeline_mode<synchronous>, transform_indices = @transform_3, window_bounds = array<i64: 8, 72>}, {pipeline_mode = #tpu.pipeline_mode<synchronous>, transform_indices = @transform_4, window_bounds = array<i64: 8, 1>}, {pipeline_mode = #tpu.pipeline_mode<synchronous>, transform_indices = @transform_5, window_bounds = array<i64: 8, 1>}, {pipeline_mode = #tpu.pipeline_mode<synchronous>, transform_indices = @transform_6, window_bounds = array<i64: 8, 1>}, {pipeline_mode = #tpu.pipeline_mode<synchronous>, transform_indices = @transform_7, window_bounds = array<i64: 8, 2048>}, {pipeline_mode = #tpu.pipeline_mode<synchronous>, transform_indices = @transform_8, window_bounds = array<i64: 9, 2048>}, {pipeline_mode = #tpu.pipeline_mode<synchronous>, transform_indices = @transform_9, window_bounds = array<i64: 2, 8, 1024>}]} {
    %c0 = arith.constant 0 : index
    %c0_0 = arith.constant 0 : index
    %0 = vector.load %arg2[%c0, %c0_0] : memref<8x112xbf16, #tpu.memory_space<vmem>>, vector<8x112xbf16>
    %c0_1 = arith.constant 0 : index
    %c0_2 = arith.constant 0 : index
    %1 = vector.load %arg1[%c0_1, %c0_2] : memref<112x2048xbf16, #tpu.memory_space<vmem>>, vector<112x2048xbf16>
    %cst = arith.constant dense<0.000000e+00> : vector<8x2048xf32>
    %2 = tpu.matmul %0, %1, %cst {dimension_numbers = #tpu.dot_dimension_numbers<[1], [0], [0], [1], [0, 0, 1, 1], [], []>} : vector<8x112xbf16>, vector<112x2048xbf16>, vector<8x2048xf32> -> vector<8x2048xf32>
    %c0_3 = arith.constant 0 : index
    %c0_4 = arith.constant 0 : index
    %3 = vector.load %arg3[%c0_3, %c0_4] : memref<8x1xf32, #tpu.memory_space<vmem>>, vector<8x1xf32>
    %4 = vector.broadcast %3 : vector<8x1xf32> to vector<8x2048xf32>
    %5 = arith.addf %2, %4 : vector<8x2048xf32>
    %cst_5 = arith.constant 0.000000e+00 : f32
    %6 = vector.broadcast %cst_5 : f32 to vector<8x2048xf32>
    %7 = arith.maximumf %5, %6 : vector<8x2048xf32>
    %c33_i32 = arith.constant 33 : i32
    %8 = tpu.dynamic_rotate %7 by %c33_i32 dim 1 : vector<8x2048xf32>, i32 -> vector<8x2048xf32>
    %c0_6 = arith.constant 0 : index
    %c0_7 = arith.constant 0 : index
    %9 = vector.load %arg9[%c0_6, %c0_7] : memref<9x2048xf32, #tpu.memory_space<vmem>>, vector<1x2048xf32>
    %10 = vector.broadcast %9 : vector<1x2048xf32> to vector<8x2048xf32>
    %11 = arith.mulf %8, %10 : vector<8x2048xf32>
    %c32_i32 = arith.constant 32 : i32
    %12 = tpu.dynamic_rotate %7 by %c32_i32 dim 1 : vector<8x2048xf32>, i32 -> vector<8x2048xf32>
    %c1 = arith.constant 1 : index
    %c0_8 = arith.constant 0 : index
    %13 = vector.load %arg9[%c1, %c0_8] : memref<9x2048xf32, #tpu.memory_space<vmem>>, vector<1x2048xf32>
    %14 = vector.broadcast %13 : vector<1x2048xf32> to vector<8x2048xf32>
    %15 = arith.mulf %12, %14 : vector<8x2048xf32>
    %c31_i32 = arith.constant 31 : i32
    %16 = tpu.dynamic_rotate %7 by %c31_i32 dim 1 : vector<8x2048xf32>, i32 -> vector<8x2048xf32>
    %c2 = arith.constant 2 : index
    %c0_9 = arith.constant 0 : index
    %17 = vector.load %arg9[%c2, %c0_9] : memref<9x2048xf32, #tpu.memory_space<vmem>>, vector<1x2048xf32>
    %18 = vector.broadcast %17 : vector<1x2048xf32> to vector<8x2048xf32>
    %19 = arith.mulf %16, %18 : vector<8x2048xf32>
    %c1_i32 = arith.constant 1 : i32
    %20 = tpu.dynamic_rotate %7 by %c1_i32 dim 1 : vector<8x2048xf32>, i32 -> vector<8x2048xf32>
    %c3 = arith.constant 3 : index
    %c0_10 = arith.constant 0 : index
    %21 = vector.load %arg9[%c3, %c0_10] : memref<9x2048xf32, #tpu.memory_space<vmem>>, vector<1x2048xf32>
    %22 = vector.broadcast %21 : vector<1x2048xf32> to vector<8x2048xf32>
    %23 = arith.mulf %20, %22 : vector<8x2048xf32>
    %c4 = arith.constant 4 : index
    %c0_11 = arith.constant 0 : index
    %24 = vector.load %arg9[%c4, %c0_11] : memref<9x2048xf32, #tpu.memory_space<vmem>>, vector<1x2048xf32>
    %25 = vector.broadcast %24 : vector<1x2048xf32> to vector<8x2048xf32>
    %26 = arith.mulf %7, %25 : vector<8x2048xf32>
    %c2047_i32 = arith.constant 2047 : i32
    %27 = tpu.dynamic_rotate %7 by %c2047_i32 dim 1 : vector<8x2048xf32>, i32 -> vector<8x2048xf32>
    %c5 = arith.constant 5 : index
    %c0_12 = arith.constant 0 : index
    %28 = vector.load %arg9[%c5, %c0_12] : memref<9x2048xf32, #tpu.memory_space<vmem>>, vector<1x2048xf32>
    %29 = vector.broadcast %28 : vector<1x2048xf32> to vector<8x2048xf32>
    %30 = arith.mulf %27, %29 : vector<8x2048xf32>
    %c2017_i32 = arith.constant 2017 : i32
    %31 = tpu.dynamic_rotate %7 by %c2017_i32 dim 1 : vector<8x2048xf32>, i32 -> vector<8x2048xf32>
    %c6 = arith.constant 6 : index
    %c0_13 = arith.constant 0 : index
    %32 = vector.load %arg9[%c6, %c0_13] : memref<9x2048xf32, #tpu.memory_space<vmem>>, vector<1x2048xf32>
    %33 = vector.broadcast %32 : vector<1x2048xf32> to vector<8x2048xf32>
    %34 = arith.mulf %31, %33 : vector<8x2048xf32>
    %c2016_i32 = arith.constant 2016 : i32
    %35 = tpu.dynamic_rotate %7 by %c2016_i32 dim 1 : vector<8x2048xf32>, i32 -> vector<8x2048xf32>
    %c7 = arith.constant 7 : index
    %c0_14 = arith.constant 0 : index
    %36 = vector.load %arg9[%c7, %c0_14] : memref<9x2048xf32, #tpu.memory_space<vmem>>, vector<1x2048xf32>
    %37 = vector.broadcast %36 : vector<1x2048xf32> to vector<8x2048xf32>
    %38 = arith.mulf %35, %37 : vector<8x2048xf32>
    %c2015_i32 = arith.constant 2015 : i32
    %39 = tpu.dynamic_rotate %7 by %c2015_i32 dim 1 : vector<8x2048xf32>, i32 -> vector<8x2048xf32>
    %c8 = arith.constant 8 : index
    %c0_15 = arith.constant 0 : index
    %40 = vector.load %arg9[%c8, %c0_15] : memref<9x2048xf32, #tpu.memory_space<vmem>>, vector<1x2048xf32>
    %41 = vector.broadcast %40 : vector<1x2048xf32> to vector<8x2048xf32>
    %42 = arith.mulf %39, %41 : vector<8x2048xf32>
    %43 = tpu.concatenate %11, %15, %19, %23, %26, %30, %34, %38, %42 in 0 : vector<8x2048xf32>, vector<8x2048xf32>, vector<8x2048xf32>, vector<8x2048xf32>, vector<8x2048xf32>, vector<8x2048xf32>, vector<8x2048xf32>, vector<8x2048xf32>, vector<8x2048xf32> -> vector<72x2048xf32>
    %44 = arith.truncf %43 : vector<72x2048xf32> to vector<72x2048xbf16>
    %c0_16 = arith.constant 0 : index
    %c0_17 = arith.constant 0 : index
    %45 = vector.load %arg4[%c0_16, %c0_17] : memref<8x72xbf16, #tpu.memory_space<vmem>>, vector<8x72xbf16>
    %cst_18 = arith.constant dense<0.000000e+00> : vector<8x2048xf32>
    %46 = tpu.matmul %45, %44, %cst_18 {dimension_numbers = #tpu.dot_dimension_numbers<[1], [0], [0], [1], [0, 0, 1, 1], [], []>} : vector<8x72xbf16>, vector<72x2048xbf16>, vector<8x2048xf32> -> vector<8x2048xf32>
    %c0_19 = arith.constant 0 : index
    %c0_20 = arith.constant 0 : index
    %47 = vector.load %arg5[%c0_19, %c0_20] : memref<8x1xf32, #tpu.memory_space<vmem>>, vector<8x1xf32>
    %48 = vector.broadcast %47 : vector<8x1xf32> to vector<8x2048xf32>
    %49 = arith.addf %46, %48 : vector<8x2048xf32>
    %cst_21 = arith.constant dense<0.000000e+00> : vector<8xf32>
    %50 = vector.multi_reduction <add>, %49, %cst_21 [1] : vector<8x2048xf32> to vector<8xf32>
    %51 = vector.shape_cast %50 : vector<8xf32> to vector<8x1xf32>
    %cst_22 = arith.constant 4.8828125E-4 : f32
    %52 = vector.broadcast %cst_22 : f32 to vector<8x1xf32>
    %53 = arith.mulf %51, %52 : vector<8x1xf32>
    %54 = vector.broadcast %53 : vector<8x1xf32> to vector<8x2048xf32>
    %55 = arith.subf %49, %54 : vector<8x2048xf32>
    %56 = arith.mulf %55, %55 : vector<8x2048xf32>
    %cst_23 = arith.constant dense<0.000000e+00> : vector<8xf32>
    %57 = vector.multi_reduction <add>, %56, %cst_23 [1] : vector<8x2048xf32> to vector<8xf32>
    %58 = vector.shape_cast %57 : vector<8xf32> to vector<8x1xf32>
    %cst_24 = arith.constant 4.8828125E-4 : f32
    %59 = vector.broadcast %cst_24 : f32 to vector<8x1xf32>
    %60 = arith.mulf %58, %59 : vector<8x1xf32>
    %c0_25 = arith.constant 0 : index
    %c0_26 = arith.constant 0 : index
    %61 = vector.load %arg6[%c0_25, %c0_26] : memref<8x1xf32, #tpu.memory_space<vmem>>, vector<8x1xf32>
    %cst_27 = arith.constant 9.99999974E-6 : f32
    %62 = vector.broadcast %cst_27 : f32 to vector<8x1xf32>
    %63 = arith.addf %60, %62 : vector<8x1xf32>
    %64 = math.rsqrt %63 : vector<8x1xf32>
    %65 = arith.mulf %61, %64 : vector<8x1xf32>
    %66 = vector.broadcast %65 : vector<8x1xf32> to vector<8x2048xf32>
    %67 = arith.mulf %55, %66 : vector<8x2048xf32>
    %c0_28 = arith.constant 0 : index
    %c0_29 = arith.constant 0 : index
    %68 = vector.load %arg7[%c0_28, %c0_29] : memref<8x1xf32, #tpu.memory_space<vmem>>, vector<8x1xf32>
    %69 = vector.broadcast %68 : vector<8x1xf32> to vector<8x2048xf32>
    %70 = arith.addf %67, %69 : vector<8x2048xf32>
    %c0_30 = arith.constant 0 : index
    %c0_31 = arith.constant 0 : index
    %71 = vector.load %arg8[%c0_30, %c0_31] : memref<8x2048xf32, #tpu.memory_space<vmem>>, vector<8x2048xf32>
    %72 = arith.addf %70, %71 : vector<8x2048xf32>
    %cst_32 = arith.constant 0.000000e+00 : f32
    %73 = vector.broadcast %cst_32 : f32 to vector<8x2048xf32>
    %74 = arith.maximumf %72, %73 : vector<8x2048xf32>
    %75 = vector.extract_strided_slice %74 {offsets = [0, 0], sizes = [8, 1024], strides = [1, 1]} : vector<8x2048xf32> to vector<8x1024xf32>
    %c0_33 = arith.constant 0 : index
    %c0_34 = arith.constant 0 : index
    %c0_35 = arith.constant 0 : index
    %76 = vector.load %arg10[%c0_33, %c0_34, %c0_35] : memref<2x8x1024xf32, #tpu.memory_space<vmem>>, vector<1x8x1024xf32>
    %77 = vector.shape_cast %76 : vector<1x8x1024xf32> to vector<8x1024xf32>
    %78 = vector.shape_cast %75 : vector<8x1024xf32> to vector<1x8x1024xf32>
    tpu.vector_store %arg10[%c0_33, %c0_34, %c0_35], %78 {strides = array<i32>} : memref<2x8x1024xf32, #tpu.memory_space<vmem>>, vector<1x8x1024xf32>,
    %79 = vector.extract_strided_slice %74 {offsets = [0, 1024], sizes = [8, 1024], strides = [1, 1]} : vector<8x2048xf32> to vector<8x1024xf32>
    %c1_36 = arith.constant 1 : index
    %c0_37 = arith.constant 0 : index
    %c0_38 = arith.constant 0 : index
    %80 = vector.load %arg10[%c1_36, %c0_37, %c0_38] : memref<2x8x1024xf32, #tpu.memory_space<vmem>>, vector<1x8x1024xf32>
    %81 = vector.shape_cast %80 : vector<1x8x1024xf32> to vector<8x1024xf32>
    %82 = vector.shape_cast %79 : vector<8x1024xf32> to vector<1x8x1024xf32>
    tpu.vector_store %arg10[%c1_36, %c0_37, %c0_38], %82 {strides = array<i32>} : memref<2x8x1024xf32, #tpu.memory_space<vmem>>, vector<1x8x1024xf32>,
    return
  }
  func.func @transform_0(%arg0: i32) -> (i32, i32) {
    %c0_i32 = arith.constant 0 : i32
    %c0_i32_0 = arith.constant 0 : i32
    %c0_i32_1 = arith.constant 0 : i32
    return %c0_i32, %c0_i32_0 : i32, i32
  }
  func.func @transform_1(%arg0: i32) -> (i32, i32) {
    %c0_i32 = arith.constant 0 : i32
    %c0_i32_0 = arith.constant 0 : i32
    %c0_i32_1 = arith.constant 0 : i32
    return %c0_i32, %c0_i32_0 : i32, i32
  }
  func.func @transform_2(%arg0: i32) -> (i32, i32) {
    %c0_i32 = arith.constant 0 : i32
    %c0_i32_0 = arith.constant 0 : i32
    %c0_i32_1 = arith.constant 0 : i32
    return %c0_i32, %c0_i32_0 : i32, i32
  }
  func.func @transform_3(%arg0: i32) -> (i32, i32) {
    %c0_i32 = arith.constant 0 : i32
    %c0_i32_0 = arith.constant 0 : i32
    %c0_i32_1 = arith.constant 0 : i32
    return %c0_i32, %c0_i32_0 : i32, i32
  }
  func.func @transform_4(%arg0: i32) -> (i32, i32) {
    %c0_i32 = arith.constant 0 : i32
    %c0_i32_0 = arith.constant 0 : i32
    %c0_i32_1 = arith.constant 0 : i32
    return %c0_i32, %c0_i32_0 : i32, i32
  }
  func.func @transform_5(%arg0: i32) -> (i32, i32) {
    %c0_i32 = arith.constant 0 : i32
    %c0_i32_0 = arith.constant 0 : i32
    %c0_i32_1 = arith.constant 0 : i32
    return %c0_i32, %c0_i32_0 : i32, i32
  }
  func.func @transform_6(%arg0: i32) -> (i32, i32) {
    %c0_i32 = arith.constant 0 : i32
    %c0_i32_0 = arith.constant 0 : i32
    %c0_i32_1 = arith.constant 0 : i32
    return %c0_i32, %c0_i32_0 : i32, i32
  }
  func.func @transform_7(%arg0: i32) -> (i32, i32) {
    %c0_i32 = arith.constant 0 : i32
    %c0_i32_0 = arith.constant 0 : i32
    %c0_i32_1 = arith.constant 0 : i32
    return %c0_i32, %c0_i32_0 : i32, i32
  }
  func.func @transform_8(%arg0: i32) -> (i32, i32) {
    %c0_i32 = arith.constant 0 : i32
    %c0_i32_0 = arith.constant 0 : i32
    %c0_i32_1 = arith.constant 0 : i32
    return %c0_i32, %c0_i32_0 : i32, i32
  }
  func.func @transform_9(%arg0: i32) -> (i32, i32, i32) {
    %c0_i32 = arith.constant 0 : i32
    %c0_i32_0 = arith.constant 0 : i32
    %c0_i32_1 = arith.constant 0 : i32
    %c0_i32_2 = arith.constant 0 : i32
    return %c0_i32, %c0_i32_0, %c0_i32_1 : i32, i32, i32
  }
}

</mosaic_0001>

<llo_original>
// kernel: image_upsample_forward.1
$region0: #{image_upsample_forward.1}
  #allocation0 [shape = 'u32[]', space=smem, size = 0x4, offset = 0x4, fixed_abs, tag = 'smem constant byte address 0x4 - core index']
  #allocation1 [shape = 'u32[72,128]{1,0:T(1,128)}', space=vmem, size = 0x9000, scoped, tag = 'internal scratch']
  %s0 = inlined_call_operand.vmem [shape: bf16[112,2048], index: 0, kind: input, shape index: {}]
  %s1 = inlined_call_operand.vmem [shape: bf16[8,112], index: 1, kind: input, shape index: {}]
  %s2 = inlined_call_operand.vmem [shape: f32[8,1], index: 2, kind: input, shape index: {}]
  %s3 = inlined_call_operand.vmem [shape: bf16[8,72], index: 3, kind: input, shape index: {}]
  %s4 = inlined_call_operand.vmem [shape: f32[8,1], index: 4, kind: input, shape index: {}]
  %s5 = inlined_call_operand.vmem [shape: f32[8,1], index: 5, kind: input, shape index: {}]
  %s6 = inlined_call_operand.vmem [shape: f32[8,1], index: 6, kind: input, shape index: {}]
  %s7 = inlined_call_operand.vmem [shape: f32[8,2048], index: 7, kind: input, shape index: {}]
  %s8 = inlined_call_operand.vmem [shape: f32[9,2048], index: 8, kind: input, shape index: {}]
  %s9 = inlined_call_operand.vmem [shape: f32[2,8,1024], index: 9, kind: output, shape index: {}]
  %s10 = sld [smem:[#allocation0]]
  $region46: #{image_upsample_forward.1} parent=0
    _
  %s12 = ssub.s32 1, %s10
  %s13 = scalar_select 0, %s12, %s10
  // Predicated region
  $region2: #{image_upsample_forward.1} parent=0 // pred_check
    _
  $region3: #{image_upsample_forward.1} parent=0 // pred_check_branch
    %15 = sbr.rel (0) target = $region5
  $region4: #{image_upsample_forward.1} parent=0 // pred_region
    _
  $region5: #{image_upsample_forward.1} parent=0 // pred_fallthru
    _
  // Predicated region
  $region6: #{image_upsample_forward.1} parent=0 // pred_check
    _
  $region7: #{image_upsample_forward.1} parent=0 // pred_check_branch
    %17 = sbr.rel (0) target = $region9
  $region8: #{image_upsample_forward.1} parent=0 // pred_region
    _
  $region9: #{image_upsample_forward.1} parent=0 // pred_fallthru
    _
  // Predicated region
  $region10: #{image_upsample_forward.1} parent=0 // pred_check
    _
  $region11: #{image_upsample_forward.1} parent=0 // pred_check_branch
    %19 = sbr.rel (0) target = $region13
  $region12: #{image_upsample_forward.1} parent=0 // pred_region
    _
  $region13: #{image_upsample_forward.1} parent=0 // pred_fallthru
    _
  // Predicated region
  $region14: #{image_upsample_forward.1} parent=0 // pred_check
    _
  $region15: #{image_upsample_forward.1} parent=0 // pred_check_branch
    %21 = sbr.rel (0) target = $region17
  $region16: #{image_upsample_forward.1} parent=0 // pred_region
    _
  $region17: #{image_upsample_forward.1} parent=0 // pred_fallthru
    _
  // Predicated region
  $region18: #{image_upsample_forward.1} parent=0 // pred_check
    _
  $region19: #{image_upsample_forward.1} parent=0 // pred_check_branch
    %23 = sbr.rel (0) target = $region21
  $region20: #{image_upsample_forward.1} parent=0 // pred_region
    _
  $region21: #{image_upsample_forward.1} parent=0 // pred_fallthru
    _
  // Predicated region
  $region22: #{image_upsample_forward.1} parent=0 // pred_check
    _
  $region23: #{image_upsample_forward.1} parent=0 // pred_check_branch
    %25 = sbr.rel (0) target = $region25
  $region24: #{image_upsample_forward.1} parent=0 // pred_region
    _
  $region25: #{image_upsample_forward.1} parent=0 // pred_fallthru
    _
  // Predicated region
  $region26: #{image_upsample_forward.1} parent=0 // pred_check
    _
  $region27: #{image_upsample_forward.1} parent=0 // pred_check_branch
    %27 = sbr.rel (0) target = $region29
  $region28: #{image_upsample_forward.1} parent=0 // pred_region
    _
  $region29: #{image_upsample_forward.1} parent=0 // pred_fallthru
    _
  // Predicated region
  $region30: #{image_upsample_forward.1} parent=0 // pred_check
    _
  $region31: #{image_upsample_forward.1} parent=0 // pred_check_branch
    %29 = sbr.rel (0) target = $region33
  $region32: #{image_upsample_forward.1} parent=0 // pred_region
    _
  $region33: #{image_upsample_forward.1} parent=0 // pred_fallthru
    _
  // Predicated region
  $region34: #{image_upsample_forward.1} parent=0 // pred_check
    _
  $region35: #{image_upsample_forward.1} parent=0 // pred_check_branch
    %31 = sbr.rel (0) target = $region37
  $region36: #{image_upsample_forward.1} parent=0 // pred_region
    _
  $region37: #{image_upsample_forward.1} parent=0 // pred_fallthru
    _
  %v33 = vld [vmem:[%s1] sm:$0xf]
  %v34 = vld [vmem:[%s0] sm:$0xff]
  %v35 = vld [vmem:[%s0 + $0x8] sm:$0xff]
  %v36 = vld [vmem:[%s0 + $0x10] sm:$0xff]
  %v37 = vld [vmem:[%s0 + $0x18] sm:$0xff]
  %v38 = vld [vmem:[%s0 + $0x20] sm:$0xff]
  %v39 = vld [vmem:[%s0 + $0x28] sm:$0xff]
  %v40 = vld [vmem:[%s0 + $0x30] sm:$0xff]
  %v41 = vld [vmem:[%s0 + $0x38] sm:$0xff]
  %v42 = vld [vmem:[%s0 + $0x40] sm:$0xff]
  %v43 = vld [vmem:[%s0 + $0x48] sm:$0xff]
  %v44 = vld [vmem:[%s0 + $0x50] sm:$0xff]
  %v45 = vld [vmem:[%s0 + $0x58] sm:$0xff]
  %v46 = vld [vmem:[%s0 + $0x60] sm:$0xff]
  %v47 = vld [vmem:[%s0 + $0x68] sm:$0xff]
  %v48 = vld [vmem:[%s0 + $0x70] sm:$0xff]
  %v49 = vld [vmem:[%s0 + $0x78] sm:$0xff]
  %v50 = vld [vmem:[%s0 + $0x80] sm:$0xff]
  %v51 = vld [vmem:[%s0 + $0x88] sm:$0xff]
  %v52 = vld [vmem:[%s0 + $0x90] sm:$0xff]
  %v53 = vld [vmem:[%s0 + $0x98] sm:$0xff]
  %v54 = vld [vmem:[%s0 + $0xa0] sm:$0xff]
  %v55 = vld [vmem:[%s0 + $0xa8] sm:$0xff]
  %v56 = vld [vmem:[%s0 + $0xb0] sm:$0xff]
  %v57 = vld [vmem:[%s0 + $0xb8] sm:$0xff]
  %v58 = vld [vmem:[%s0 + $0xc0] sm:$0xff]
  %v59 = vld [vmem:[%s0 + $0xc8] sm:$0xff]
  %v60 = vld [vmem:[%s0 + $0xd0] sm:$0xff]
  %v61 = vld [vmem:[%s0 + $0xd8] sm:$0xff]
  %v62 = vld [vmem:[%s0 + $0xe0] sm:$0xff]
  %v63 = vld [vmem:[%s0 + $0xe8] sm:$0xff]
  %v64 = vld [vmem:[%s0 + $0xf0] sm:$0xff]
  %v65 = vld [vmem:[%s0 + $0xf8] sm:$0xff]
  %v66 = vld [vmem:[%s0 + $0x100] sm:$0xff]
  %v67 = vld [vmem:[%s0 + $0x108] sm:$0xff]
  %v68 = vld [vmem:[%s0 + $0x110] sm:$0xff]
  %v69 = vld [vmem:[%s0 + $0x118] sm:$0xff]
  %v70 = vld [vmem:[%s0 + $0x120] sm:$0xff]
  %v71 = vld [vmem:[%s0 + $0x128] sm:$0xff]
  %v72 = vld [vmem:[%s0 + $0x130] sm:$0xff]
  %v73 = vld [vmem:[%s0 + $0x138] sm:$0xff]
  %v74 = vld [vmem:[%s0 + $0x140] sm:$0xff]
  %v75 = vld [vmem:[%s0 + $0x148] sm:$0xff]
  %v76 = vld [vmem:[%s0 + $0x150] sm:$0xff]
  %v77 = vld [vmem:[%s0 + $0x158] sm:$0xff]
  %v78 = vld [vmem:[%s0 + $0x160] sm:$0xff]
  %v79 = vld [vmem:[%s0 + $0x168] sm:$0xff]
  %v80 = vld [vmem:[%s0 + $0x170] sm:$0xff]
  %v81 = vld [vmem:[%s0 + $0x178] sm:$0xff]
  %v82 = vld [vmem:[%s0 + $0x180] sm:$0xff]
  %v83 = vld [vmem:[%s0 + $0x188] sm:$0xff]
  %v84 = vld [vmem:[%s0 + $0x190] sm:$0xff]
  %v85 = vld [vmem:[%s0 + $0x198] sm:$0xff]
  %v86 = vld [vmem:[%s0 + $0x1a0] sm:$0xff]
  %v87 = vld [vmem:[%s0 + $0x1a8] sm:$0xff]
  %v88 = vld [vmem:[%s0 + $0x1b0] sm:$0xff]
  %v89 = vld [vmem:[%s0 + $0x1b8] sm:$0xff]
  %v90 = vld [vmem:[%s0 + $0x1c0] sm:$0xff]
  %v91 = vld [vmem:[%s0 + $0x1c8] sm:$0xff]
  %v92 = vld [vmem:[%s0 + $0x1d0] sm:$0xff]
  %v93 = vld [vmem:[%s0 + $0x1d8] sm:$0xff]
  %v94 = vld [vmem:[%s0 + $0x1e0] sm:$0xff]
  %v95 = vld [vmem:[%s0 + $0x1e8] sm:$0xff]
  %v96 = vld [vmem:[%s0 + $0x1f0] sm:$0xff]
  %v97 = vld [vmem:[%s0 + $0x1f8] sm:$0xff]
  %v98 = vld [vmem:[%s0 + $0x200] sm:$0xff]
  %v99 = vld [vmem:[%s0 + $0x208] sm:$0xff]
  %v100 = vld [vmem:[%s0 + $0x210] sm:$0xff]
  %v101 = vld [vmem:[%s0 + $0x218] sm:$0xff]
  %v102 = vld [vmem:[%s0 + $0x220] sm:$0xff]
  %v103 = vld [vmem:[%s0 + $0x228] sm:$0xff]
  %v104 = vld [vmem:[%s0 + $0x230] sm:$0xff]
  %v105 = vld [vmem:[%s0 + $0x238] sm:$0xff]
  %v106 = vld [vmem:[%s0 + $0x240] sm:$0xff]
  %v107 = vld [vmem:[%s0 + $0x248] sm:$0xff]
  %v108 = vld [vmem:[%s0 + $0x250] sm:$0xff]
  %v109 = vld [vmem:[%s0 + $0x258] sm:$0xff]
  %v110 = vld [vmem:[%s0 + $0x260] sm:$0xff]
  %v111 = vld [vmem:[%s0 + $0x268] sm:$0xff]
  %v112 = vld [vmem:[%s0 + $0x270] sm:$0xff]
  %v113 = vld [vmem:[%s0 + $0x278] sm:$0xff]
  %v114 = vld [vmem:[%s0 + $0x280] sm:$0xff]
  %v115 = vld [vmem:[%s0 + $0x288] sm:$0xff]
  %v116 = vld [vmem:[%s0 + $0x290] sm:$0xff]
  %v117 = vld [vmem:[%s0 + $0x298] sm:$0xff]
  %v118 = vld [vmem:[%s0 + $0x2a0] sm:$0xff]
  %v119 = vld [vmem:[%s0 + $0x2a8] sm:$0xff]
  %v120 = vld [vmem:[%s0 + $0x2b0] sm:$0xff]
  %v121 = vld [vmem:[%s0 + $0x2b8] sm:$0xff]
  %v122 = vld [vmem:[%s0 + $0x2c0] sm:$0xff]
  %v123 = vld [vmem:[%s0 + $0x2c8] sm:$0xff]
  %v124 = vld [vmem:[%s0 + $0x2d0] sm:$0xff]
  %v125 = vld [vmem:[%s0 + $0x2d8] sm:$0xff]
  %v126 = vld [vmem:[%s0 + $0x2e0] sm:$0xff]
  %v127 = vld [vmem:[%s0 + $0x2e8] sm:$0xff]
  %v128 = vld [vmem:[%s0 + $0x2f0] sm:$0xff]
  %v129 = vld [vmem:[%s0 + $0x2f8] sm:$0xff]
  %v130 = vld [vmem:[%s0 + $0x300] sm:$0xff]
  %v131 = vld [vmem:[%s0 + $0x308] sm:$0xff]
  %v132 = vld [vmem:[%s0 + $0x310] sm:$0xff]
  %v133 = vld [vmem:[%s0 + $0x318] sm:$0xff]
  %v134 = vld [vmem:[%s0 + $0x320] sm:$0xff]
  %v135 = vld [vmem:[%s0 + $0x328] sm:$0xff]
  %v136 = vld [vmem:[%s0 + $0x330] sm:$0xff]
  %v137 = vld [vmem:[%s0 + $0x338] sm:$0xff]
  %v138 = vld [vmem:[%s0 + $0x340] sm:$0xff]
  %v139 = vld [vmem:[%s0 + $0x348] sm:$0xff]
  %v140 = vld [vmem:[%s0 + $0x350] sm:$0xff]
  %v141 = vld [vmem:[%s0 + $0x358] sm:$0xff]
  %v142 = vld [vmem:[%s0 + $0x360] sm:$0xff]
  %v143 = vld [vmem:[%s0 + $0x368] sm:$0xff]
  %v144 = vld [vmem:[%s0 + $0x370] sm:$0xff]
  %v145 = vld [vmem:[%s0 + $0x378] sm:$0xff]
  %v146 = vld [vmem:[%s2] sm:$0xff]
  %148 = vset.pattern.permute.xlu0 0
  %149 = vperm.xlu0 %148, %v146
  %v150 = vpop.permute.xlu0 %149
  %v264 = vunpack.c.l.b16 %v34
  %v265 = vunpack.c.h.b16 %v34
  %v266 = vunpack.c.l.b16 %v35
  %v267 = vunpack.c.h.b16 %v35
  %v268 = vunpack.c.l.b16 %v36
  %v269 = vunpack.c.h.b16 %v36
  %v270 = vunpack.c.l.b16 %v37
  %v271 = vunpack.c.h.b16 %v37
  %v272 = vunpack.c.l.b16 %v38
  %v273 = vunpack.c.h.b16 %v38
  %v274 = vunpack.c.l.b16 %v39
  %v275 = vunpack.c.h.b16 %v39
  %v276 = vunpack.c.l.b16 %v40
  %v277 = vunpack.c.h.b16 %v40
  %v278 = vunpack.c.l.b16 %v41
  %v279 = vunpack.c.h.b16 %v41
  %v280 = vunpack.c.l.b16 %v42
  %v281 = vunpack.c.h.b16 %v42
  %v282 = vunpack.c.l.b16 %v43
  %v283 = vunpack.c.h.b16 %v43
  %v284 = vunpack.c.l.b16 %v44
  %v285 = vunpack.c.h.b16 %v44
  %v286 = vunpack.c.l.b16 %v45
  %v287 = vunpack.c.h.b16 %v45
  %v288 = vunpack.c.l.b16 %v46
  %v289 = vunpack.c.h.b16 %v46
  %v290 = vunpack.c.l.b16 %v47
  %v291 = vunpack.c.h.b16 %v47
  %v292 = vunpack.c.l.b16 %v48
  %v293 = vunpack.c.h.b16 %v48
  %v294 = vunpack.c.l.b16 %v49
  %v295 = vunpack.c.h.b16 %v49
  %v296 = vunpack.c.l.b16 %v50
  %v297 = vunpack.c.h.b16 %v50
  %v298 = vunpack.c.l.b16 %v51
  %v299 = vunpack.c.h.b16 %v51
  %v300 = vunpack.c.l.b16 %v52
  %v301 = vunpack.c.h.b16 %v52
  %v302 = vunpack.c.l.b16 %v53
  %v303 = vunpack.c.h.b16 %v53
  %v304 = vunpack.c.l.b16 %v54
  %v305 = vunpack.c.h.b16 %v54
  %v306 = vunpack.c.l.b16 %v55
  %v307 = vunpack.c.h.b16 %v55
  %v308 = vunpack.c.l.b16 %v56
  %v309 = vunpack.c.h.b16 %v56
  %v310 = vunpack.c.l.b16 %v57
  %v311 = vunpack.c.h.b16 %v57
  %v312 = vunpack.c.l.b16 %v58
  %v313 = vunpack.c.h.b16 %v58
  %v314 = vunpack.c.l.b16 %v59
  %v315 = vunpack.c.h.b16 %v59
  %v316 = vunpack.c.l.b16 %v60
  %v317 = vunpack.c.h.b16 %v60
  %v318 = vunpack.c.l.b16 %v61
  %v319 = vunpack.c.h.b16 %v61
  %v320 = vunpack.c.l.b16 %v62
  %v321 = vunpack.c.h.b16 %v62
  %v322 = vunpack.c.l.b16 %v63
  %v323 = vunpack.c.h.b16 %v63
  %v324 = vunpack.c.l.b16 %v64
  %v325 = vunpack.c.h.b16 %v64
  %v326 = vunpack.c.l.b16 %v65
  %v327 = vunpack.c.h.b16 %v65
  %v328 = vunpack.c.l.b16 %v66
  %v329 = vunpack.c.h.b16 %v66
  %v330 = vunpack.c.l.b16 %v67
  %v331 = vunpack.c.h.b16 %v67
  %v332 = vunpack.c.l.b16 %v68
  %v333 = vunpack.c.h.b16 %v68
  %v334 = vunpack.c.l.b16 %v69
  %v335 = vunpack.c.h.b16 %v69
  %v336 = vunpack.c.l.b16 %v70
  %v337 = vunpack.c.h.b16 %v70
  %v338 = vunpack.c.l.b16 %v71
  %v339 = vunpack.c.h.b16 %v71
  %v340 = vunpack.c.l.b16 %v72
  %v341 = vunpack.c.h.b16 %v72
  %v342 = vunpack.c.l.b16 %v73
  %v343 = vunpack.c.h.b16 %v73
  %v344 = vunpack.c.l.b16 %v74
  %v345 = vunpack.c.h.b16 %v74
  %v346 = vunpack.c.l.b16 %v75
  %v347 = vunpack.c.h.b16 %v75
  %v348 = vunpack.c.l.b16 %v76
  %v349 = vunpack.c.h.b16 %v76
  %v350 = vunpack.c.l.b16 %v77
  %v351 = vunpack.c.h.b16 %v77
  %v352 = vunpack.c.l.b16 %v78
  %v353 = vunpack.c.h.b16 %v78
  %v354 = vunpack.c.l.b16 %v79
  %v355 = vunpack.c.h.b16 %v79
  %v356 = vunpack.c.l.b16 %v80
  %v357 = vunpack.c.h.b16 %v80
  %v358 = vunpack.c.l.b16 %v81
  %v359 = vunpack.c.h.b16 %v81
  %v360 = vunpack.c.l.b16 %v82
  %v361 = vunpack.c.h.b16 %v82
  %v362 = vunpack.c.l.b16 %v83
  %v363 = vunpack.c.h.b16 %v83
  %v364 = vunpack.c.l.b16 %v84
  %v365 = vunpack.c.h.b16 %v84
  %v366 = vunpack.c.l.b16 %v85
  %v367 = vunpack.c.h.b16 %v85
  %v368 = vunpack.c.l.b16 %v86
  %v369 = vunpack.c.h.b16 %v86
  %v370 = vunpack.c.l.b16 %v87
  %v371 = vunpack.c.h.b16 %v87
  %v372 = vunpack.c.l.b16 %v88
  %v373 = vunpack.c.h.b16 %v88
  %v374 = vunpack.c.l.b16 %v89
  %v375 = vunpack.c.h.b16 %v89
  %v376 = vunpack.c.l.b16 %v90
  %v377 = vunpack.c.h.b16 %v90
  %v378 = vunpack.c.l.b16 %v91
  %v379 = vunpack.c.h.b16 %v91
  %v380 = vunpack.c.l.b16 %v92
  %v381 = vunpack.c.h.b16 %v92
  %v382 = vunpack.c.l.b16 %v93
  %v383 = vunpack.c.h.b16 %v93
  %v384 = vunpack.c.l.b16 %v94
  %v385 = vunpack.c.h.b16 %v94
  %v386 = vunpack.c.l.b16 %v95
  %v387 = vunpack.c.h.b16 %v95
  %v388 = vunpack.c.l.b16 %v96
  %v389 = vunpack.c.h.b16 %v96
  %v390 = vunpack.c.l.b16 %v97
  %v391 = vunpack.c.h.b16 %v97
  %v392 = vunpack.c.l.b16 %v98
  %v393 = vunpack.c.h.b16 %v98
  %v394 = vunpack.c.l.b16 %v99
  %v395 = vunpack.c.h.b16 %v99
  %v396 = vunpack.c.l.b16 %v100
  %v397 = vunpack.c.h.b16 %v100
  %v398 = vunpack.c.l.b16 %v101
  %v399 = vunpack.c.h.b16 %v101
  %v400 = vunpack.c.l.b16 %v102
  %v401 = vunpack.c.h.b16 %v102
  %v402 = vunpack.c.l.b16 %v103
  %v403 = vunpack.c.h.b16 %v103
  %v404 = vunpack.c.l.b16 %v104
  %v405 = vunpack.c.h.b16 %v104
  %v406 = vunpack.c.l.b16 %v105
  %v407 = vunpack.c.h.b16 %v105
  %v408 = vunpack.c.l.b16 %v106
  %v409 = vunpack.c.h.b16 %v106
  %v410 = vunpack.c.l.b16 %v107
  %v411 = vunpack.c.h.b16 %v107
  %v412 = vunpack.c.l.b16 %v108
  %v413 = vunpack.c.h.b16 %v108
  %v414 = vunpack.c.l.b16 %v109
  %v415 = vunpack.c.h.b16 %v109
  %v416 = vunpack.c.l.b16 %v110
  %v417 = vunpack.c.h.b16 %v110
  %v418 = vunpack.c.l.b16 %v111
  %v419 = vunpack.c.h.b16 %v111
  %v420 = vunpack.c.l.b16 %v112
  %v421 = vunpack.c.h.b16 %v112
  %v422 = vunpack.c.l.b16 %v113
  %v423 = vunpack.c.h.b16 %v113
  %v424 = vunpack.c.l.b16 %v114
  %v425 = vunpack.c.h.b16 %v114
  %v426 = vunpack.c.l.b16 %v115
  %v427 = vunpack.c.h.b16 %v115
  %v428 = vunpack.c.l.b16 %v116
  %v429 = vunpack.c.h.b16 %v116
  %v430 = vunpack.c.l.b16 %v117
  %v431 = vunpack.c.h.b16 %v117
  %v432 = vunpack.c.l.b16 %v118
  %v433 = vunpack.c.h.b16 %v118
  %v434 = vunpack.c.l.b16 %v119
  %v435 = vunpack.c.h.b16 %v119
  %v436 = vunpack.c.l.b16 %v120
  %v437 = vunpack.c.h.b16 %v120
  %v438 = vunpack.c.l.b16 %v121
  %v439 = vunpack.c.h.b16 %v121
  %v440 = vunpack.c.l.b16 %v122
  %v441 = vunpack.c.h.b16 %v122
  %v442 = vunpack.c.l.b16 %v123
  %v443 = vunpack.c.h.b16 %v123
  %v444 = vunpack.c.l.b16 %v124
  %v445 = vunpack.c.h.b16 %v124
  %v446 = vunpack.c.l.b16 %v125
  %v447 = vunpack.c.h.b16 %v125
  %v448 = vunpack.c.l.b16 %v126
  %v449 = vunpack.c.h.b16 %v126
  %v450 = vunpack.c.l.b16 %v127
  %v451 = vunpack.c.h.b16 %v127
  %v452 = vunpack.c.l.b16 %v128
  %v453 = vunpack.c.h.b16 %v128
  %v454 = vunpack.c.l.b16 %v129
  %v455 = vunpack.c.h.b16 %v129
  %v456 = vunpack.c.l.b16 %v130
  %v457 = vunpack.c.h.b16 %v130
  %v458 = vunpack.c.l.b16 %v131
  %v459 = vunpack.c.h.b16 %v131
  %v460 = vunpack.c.l.b16 %v132
  %v461 = vunpack.c.h.b16 %v132
  %v462 = vunpack.c.l.b16 %v133
  %v463 = vunpack.c.h.b16 %v133
  %v464 = vunpack.c.l.b16 %v134
  %v465 = vunpack.c.h.b16 %v134
  %v466 = vunpack.c.l.b16 %v135
  %v467 = vunpack.c.h.b16 %v135
  %v468 = vunpack.c.l.b16 %v136
  %v469 = vunpack.c.h.b16 %v136
  %v470 = vunpack.c.l.b16 %v137
  %v471 = vunpack.c.h.b16 %v137
  %v472 = vunpack.c.l.b16 %v138
  %v473 = vunpack.c.h.b16 %v138
  %v474 = vunpack.c.l.b16 %v139
  %v475 = vunpack.c.h.b16 %v139
  %v476 = vunpack.c.l.b16 %v140
  %v477 = vunpack.c.h.b16 %v140
  %v478 = vunpack.c.l.b16 %v141
  %v479 = vunpack.c.h.b16 %v141
  %v480 = vunpack.c.l.b16 %v142
  %v481 = vunpack.c.h.b16 %v142
  %v482 = vunpack.c.l.b16 %v143
  %v483 = vunpack.c.h.b16 %v143
  %v484 = vunpack.c.l.b16 %v144
  %v485 = vunpack.c.h.b16 %v144
  %v486 = vunpack.c.l.b16 %v145
  %v487 = vunpack.c.h.b16 %v145
  %v488 = vpack.c.b16 %v280, %v264
  %v489 = vpack.c.b16 %v281, %v265
  %v490 = vpack.c.b16 %v282, %v266
  %v491 = vpack.c.b16 %v283, %v267
  %v492 = vpack.c.b16 %v284, %v268
  %v493 = vpack.c.b16 %v285, %v269
  %v494 = vpack.c.b16 %v286, %v270
  %v495 = vpack.c.b16 %v287, %v271
  %v496 = vpack.c.b16 %v288, %v272
  %v497 = vpack.c.b16 %v289, %v273
  %v498 = vpack.c.b16 %v290, %v274
  %v499 = vpack.c.b16 %v291, %v275
  %v500 = vpack.c.b16 %v292, %v276
  %v501 = vpack.c.b16 %v293, %v277
  %v502 = vpack.c.b16 %v294, %v278
  %v503 = vpack.c.b16 %v295, %v279
  %v504 = vpack.c.b16 %v312, %v296
  %v505 = vpack.c.b16 %v313, %v297
  %v506 = vpack.c.b16 %v314, %v298
  %v507 = vpack.c.b16 %v315, %v299
  %v508 = vpack.c.b16 %v316, %v300
  %v509 = vpack.c.b16 %v317, %v301
  %v510 = vpack.c.b16 %v318, %v302
  %v511 = vpack.c.b16 %v319, %v303
  %v512 = vpack.c.b16 %v320, %v304
  %v513 = vpack.c.b16 %v321, %v305
  %v514 = vpack.c.b16 %v322, %v306
  %v515 = vpack.c.b16 %v323, %v307
  %v516 = vpack.c.b16 %v324, %v308
  %v517 = vpack.c.b16 %v325, %v309
  %v518 = vpack.c.b16 %v326, %v310
  %v519 = vpack.c.b16 %v327, %v311
  %v520 = vpack.c.b16 %v344, %v328
  %v521 = vpack.c.b16 %v345, %v329
  %v522 = vpack.c.b16 %v346, %v330
  %v523 = vpack.c.b16 %v347, %v331
  %v524 = vpack.c.b16 %v348, %v332
  %v525 = vpack.c.b16 %v349, %v333
  %v526 = vpack.c.b16 %v350, %v334
  %v527 = vpack.c.b16 %v351, %v335
  %v528 = vpack.c.b16 %v352, %v336
  %v529 = vpack.c.b16 %v353, %v337
  %v530 = vpack.c.b16 %v354, %v338
  %v531 = vpack.c.b16 %v355, %v339
  %v532 = vpack.c.b16 %v356, %v340
  %v533 = vpack.c.b16 %v357, %v341
  %v534 = vpack.c.b16 %v358, %v342
  %v535 = vpack.c.b16 %v359, %v343
  %v536 = vpack.c.b16 %v376, %v360
  %v537 = vpack.c.b16 %v377, %v361
  %v538 = vpack.c.b16 %v378, %v362
  %v539 = vpack.c.b16 %v379, %v363
  %v540 = vpack.c.b16 %v380, %v364
  %v541 = vpack.c.b16 %v381, %v365
  %v542 = vpack.c.b16 %v382, %v366
  %v543 = vpack.c.b16 %v383, %v367
  %v544 = vpack.c.b16 %v384, %v368
  %v545 = vpack.c.b16 %v385, %v369
  %v546 = vpack.c.b16 %v386, %v370
  %v547 = vpack.c.b16 %v387, %v371
  %v548 = vpack.c.b16 %v388, %v372
  %v549 = vpack.c.b16 %v389, %v373
  %v550 = vpack.c.b16 %v390, %v374
  %v551 = vpack.c.b16 %v391, %v375
  %v552 = vpack.c.b16 %v408, %v392
  %v553 = vpack.c.b16 %v409, %v393
  %v554 = vpack.c.b16 %v410, %v394
  %v555 = vpack.c.b16 %v411, %v395
  %v556 = vpack.c.b16 %v412, %v396
  %v557 = vpack.c.b16 %v413, %v397
  %v558 = vpack.c.b16 %v414, %v398
  %v559 = vpack.c.b16 %v415, %v399
  %v560 = vpack.c.b16 %v416, %v400
  %v561 = vpack.c.b16 %v417, %v401
  %v562 = vpack.c.b16 %v418, %v402
  %v563 = vpack.c.b16 %v419, %v403
  %v564 = vpack.c.b16 %v420, %v404
  %v565 = vpack.c.b16 %v421, %v405
  %v566 = vpack.c.b16 %v422, %v406
  %v567 = vpack.c.b16 %v423, %v407
  %v568 = vpack.c.b16 %v440, %v424
  %v569 = vpack.c.b16 %v441, %v425
  %v570 = vpack.c.b16 %v442, %v426
  %v571 = vpack.c.b16 %v443, %v427
  %v572 = vpack.c.b16 %v444, %v428
  %v573 = vpack.c.b16 %v445, %v429
  %v574 = vpack.c.b16 %v446, %v430
  %v575 = vpack.c.b16 %v447, %v431
  %v576 = vpack.c.b16 %v448, %v432
  %v577 = vpack.c.b16 %v449, %v433
  %v578 = vpack.c.b16 %v450, %v434
  %v579 = vpack.c.b16 %v451, %v435
  %v580 = vpack.c.b16 %v452, %v436
  %v581 = vpack.c.b16 %v453, %v437
  %v582 = vpack.c.b16 %v454, %v438
  %v583 = vpack.c.b16 %v455, %v439
  %v584 = vpack.c.b16 %v472, %v456
  %v585 = vpack.c.b16 %v473, %v457
  %v586 = vpack.c.b16 %v474, %v458
  %v587 = vpack.c.b16 %v475, %v459
  %v588 = vpack.c.b16 %v476, %v460
  %v589 = vpack.c.b16 %v477, %v461
  %v590 = vpack.c.b16 %v478, %v462
  %v591 = vpack.c.b16 %v479, %v463
  %v592 = vpack.c.b16 %v480, %v464
  %v593 = vpack.c.b16 %v481, %v465
  %v594 = vpack.c.b16 %v482, %v466
  %v595 = vpack.c.b16 %v483, %v467
  %v596 = vpack.c.b16 %v484, %v468
  %v597 = vpack.c.b16 %v485, %v469
  %v598 = vpack.c.b16 %v486, %v470
  %v599 = vpack.c.b16 %v487, %v471
  %vm712 = vcmask 916480
  %v714 = vsel %vm712, %v33, 0
  %716 = vmatpush.bf16.msra.mxu0 0
  %717 = vmatpush.bf16.msra.mxu0 %v584
  %718 = vmatpush.bf16.msra.mxu0 %v568
  %719 = vmatpush.bf16.msra.mxu0 %v552
  %720 = vmatpush.bf16.msra.mxu0 %v536
  %721 = vmatpush.bf16.msra.mxu0 %v520
  %722 = vmatpush.bf16.msra.mxu0 %v504
  %723 = vmatpush.bf16.msra.mxu0 %v488
  %724 = vmatmul.bf16.gmra.mxu0 %v714
  %v725 = vpop.f32.mrf.mxu0
  %v726 = vadd.f32 %v150, %v725
  %v727 = vpop.f32.mrf.mxu0
  %728 = vdwg.mxu0
  %729 = vmatpush.bf16.msra.mxu0 0
  %730 = vmatpush.bf16.msra.mxu0 %v585
  %731 = vmatpush.bf16.msra.mxu0 %v569
  %732 = vmatpush.bf16.msra.mxu0 %v553
  %733 = vmatpush.bf16.msra.mxu0 %v537
  %734 = vmatpush.bf16.msra.mxu0 %v521
  %735 = vmatpush.bf16.msra.mxu0 %v505
  %736 = vmatpush.bf16.msra.mxu0 %v489
  %737 = vmatmul.bf16.gmra.mxu0 %v714
  %v738 = vpop.f32.mrf.mxu0
  %v739 = vadd.f32 %v150, %v738
  %v740 = vpop.f32.mrf.mxu0
  %741 = vdwg.mxu0
  %742 = vmatpush.bf16.msra.mxu0 0
  %743 = vmatpush.bf16.msra.mxu0 %v586
  %744 = vmatpush.bf16.msra.mxu0 %v570
  %745 = vmatpush.bf16.msra.mxu0 %v554
  %746 = vmatpush.bf16.msra.mxu0 %v538
  %747 = vmatpush.bf16.msra.mxu0 %v522
  %748 = vmatpush.bf16.msra.mxu0 %v506
  %749 = vmatpush.bf16.msra.mxu0 %v490
  %750 = vmatmul.bf16.gmra.mxu0 %v714
  %v751 = vpop.f32.mrf.mxu0
  %v752 = vadd.f32 %v150, %v751
  %v753 = vpop.f32.mrf.mxu0
  %754 = vdwg.mxu0
  %755 = vmatpush.bf16.msra.mxu0 0
  %756 = vmatpush.bf16.msra.mxu0 %v587
  %757 = vmatpush.bf16.msra.mxu0 %v571
  %758 = vmatpush.bf16.msra.mxu0 %v555
  %759 = vmatpush.bf16.msra.mxu0 %v539
  %760 = vmatpush.bf16.msra.mxu0 %v523
  %761 = vmatpush.bf16.msra.mxu0 %v507
  %762 = vmatpush.bf16.msra.mxu0 %v491
  %763 = vmatmul.bf16.gmra.mxu0 %v714
  %v764 = vpop.f32.mrf.mxu0
  %v765 = vadd.f32 %v150, %v764
  %v766 = vpop.f32.mrf.mxu0
  %767 = vdwg.mxu0
  %768 = vmatpush.bf16.msra.mxu0 0
  %769 = vmatpush.bf16.msra.mxu0 %v588
  %770 = vmatpush.bf16.msra.mxu0 %v572
  %771 = vmatpush.bf16.msra.mxu0 %v556
  %772 = vmatpush.bf16.msra.mxu0 %v540
  %773 = vmatpush.bf16.msra.mxu0 %v524
  %774 = vmatpush.bf16.msra.mxu0 %v508
  %775 = vmatpush.bf16.msra.mxu0 %v492
  %776 = vmatmul.bf16.gmra.mxu0 %v714
  %v777 = vpop.f32.mrf.mxu0
  %v778 = vadd.f32 %v150, %v777
  %v779 = vpop.f32.mrf.mxu0
  %780 = vdwg.mxu0
  %781 = vmatpush.bf16.msra.mxu0 0
  %782 = vmatpush.bf16.msra.mxu0 %v589
  %783 = vmatpush.bf16.msra.mxu0 %v573
  %784 = vmatpush.bf16.msra.mxu0 %v557
  %785 = vmatpush.bf16.msra.mxu0 %v541
  %786 = vmatpush.bf16.msra.mxu0 %v525
  %787 = vmatpush.bf16.msra.mxu0 %v509
  %788 = vmatpush.bf16.msra.mxu0 %v493
  %789 = vmatmul.bf16.gmra.mxu0 %v714
  %v790 = vpop.f32.mrf.mxu0
  %v791 = vadd.f32 %v150, %v790
  %v792 = vpop.f32.mrf.mxu0
  %793 = vdwg.mxu0
  %794 = vmatpush.bf16.msra.mxu0 0
  %795 = vmatpush.bf16.msra.mxu0 %v590
  %796 = vmatpush.bf16.msra.mxu0 %v574
  %797 = vmatpush.bf16.msra.mxu0 %v558
  %798 = vmatpush.bf16.msra.mxu0 %v542
  %799 = vmatpush.bf16.msra.mxu0 %v526
  %800 = vmatpush.bf16.msra.mxu0 %v510
  %801 = vmatpush.bf16.msra.mxu0 %v494
  %802 = vmatmul.bf16.gmra.mxu0 %v714
  %v803 = vpop.f32.mrf.mxu0
  %v804 = vadd.f32 %v150, %v803
  %v805 = vpop.f32.mrf.mxu0
  %806 = vdwg.mxu0
  %807 = vmatpush.bf16.msra.mxu0 0
  %808 = vmatpush.bf16.msra.mxu0 %v591
  %809 = vmatpush.bf16.msra.mxu0 %v575
  %810 = vmatpush.bf16.msra.mxu0 %v559
  %811 = vmatpush.bf16.msra.mxu0 %v543
  %812 = vmatpush.bf16.msra.mxu0 %v527
  %813 = vmatpush.bf16.msra.mxu0 %v511
  %814 = vmatpush.bf16.msra.mxu0 %v495
  %815 = vmatmul.bf16.gmra.mxu0 %v714
  %v816 = vpop.f32.mrf.mxu0
  %v817 = vadd.f32 %v150, %v816
  %v818 = vpop.f32.mrf.mxu0
  %819 = vdwg.mxu0
  %820 = vmatpush.bf16.msra.mxu0 0
  %821 = vmatpush.bf16.msra.mxu0 %v592
  %822 = vmatpush.bf16.msra.mxu0 %v576
  %823 = vmatpush.bf16.msra.mxu0 %v560
  %824 = vmatpush.bf16.msra.mxu0 %v544
  %825 = vmatpush.bf16.msra.mxu0 %v528
  %826 = vmatpush.bf16.msra.mxu0 %v512
  %827 = vmatpush.bf16.msra.mxu0 %v496
  %828 = vmatmul.bf16.gmra.mxu0 %v714
  %v829 = vpop.f32.mrf.mxu0
  %v830 = vadd.f32 %v150, %v829
  %v831 = vpop.f32.mrf.mxu0
  %832 = vdwg.mxu0
  %833 = vmatpush.bf16.msra.mxu0 0
  %834 = vmatpush.bf16.msra.mxu0 %v593
  %835 = vmatpush.bf16.msra.mxu0 %v577
  %836 = vmatpush.bf16.msra.mxu0 %v561
  %837 = vmatpush.bf16.msra.mxu0 %v545
  %838 = vmatpush.bf16.msra.mxu0 %v529
  %839 = vmatpush.bf16.msra.mxu0 %v513
  %840 = vmatpush.bf16.msra.mxu0 %v497
  %841 = vmatmul.bf16.gmra.mxu0 %v714
  %v842 = vpop.f32.mrf.mxu0
  %v843 = vadd.f32 %v150, %v842
  %v844 = vpop.f32.mrf.mxu0
  %845 = vdwg.mxu0
  %846 = vmatpush.bf16.msra.mxu0 0
  %847 = vmatpush.bf16.msra.mxu0 %v594
  %848 = vmatpush.bf16.msra.mxu0 %v578
  %849 = vmatpush.bf16.msra.mxu0 %v562
  %850 = vmatpush.bf16.msra.mxu0 %v546
  %851 = vmatpush.bf16.msra.mxu0 %v530
  %852 = vmatpush.bf16.msra.mxu0 %v514
  %853 = vmatpush.bf16.msra.mxu0 %v498
  %854 = vmatmul.bf16.gmra.mxu0 %v714
  %v855 = vpop.f32.mrf.mxu0
  %v856 = vadd.f32 %v150, %v855
  %v857 = vpop.f32.mrf.mxu0
  %858 = vdwg.mxu0
  %859 = vmatpush.bf16.msra.mxu0 0
  %860 = vmatpush.bf16.msra.mxu0 %v595
  %861 = vmatpush.bf16.msra.mxu0 %v579
  %862 = vmatpush.bf16.msra.mxu0 %v563
  %863 = vmatpush.bf16.msra.mxu0 %v547
  %864 = vmatpush.bf16.msra.mxu0 %v531
  %865 = vmatpush.bf16.msra.mxu0 %v515
  %866 = vmatpush.bf16.msra.mxu0 %v499
  %867 = vmatmul.bf16.gmra.mxu0 %v714
  %v868 = vpop.f32.mrf.mxu0
  %v869 = vadd.f32 %v150, %v868
  %v870 = vpop.f32.mrf.mxu0
  %871 = vdwg.mxu0
  %872 = vmatpush.bf16.msra.mxu0 0
  %873 = vmatpush.bf16.msra.mxu0 %v596
  %874 = vmatpush.bf16.msra.mxu0 %v580
  %875 = vmatpush.bf16.msra.mxu0 %v564
  %876 = vmatpush.bf16.msra.mxu0 %v548
  %877 = vmatpush.bf16.msra.mxu0 %v532
  %878 = vmatpush.bf16.msra.mxu0 %v516
  %879 = vmatpush.bf16.msra.mxu0 %v500
  %880 = vmatmul.bf16.gmra.mxu0 %v714
  %v881 = vpop.f32.mrf.mxu0
  %v882 = vadd.f32 %v150, %v881
  %v883 = vpop.f32.mrf.mxu0
  %884 = vdwg.mxu0
  %885 = vmatpush.bf16.msra.mxu0 0
  %886 = vmatpush.bf16.msra.mxu0 %v597
  %887 = vmatpush.bf16.msra.mxu0 %v581
  %888 = vmatpush.bf16.msra.mxu0 %v565
  %889 = vmatpush.bf16.msra.mxu0 %v549
  %890 = vmatpush.bf16.msra.mxu0 %v533
  %891 = vmatpush.bf16.msra.mxu0 %v517
  %892 = vmatpush.bf16.msra.mxu0 %v501
  %893 = vmatmul.bf16.gmra.mxu0 %v714
  %v894 = vpop.f32.mrf.mxu0
  %v895 = vadd.f32 %v150, %v894
  %v896 = vpop.f32.mrf.mxu0
  %897 = vdwg.mxu0
  %898 = vmatpush.bf16.msra.mxu0 0
  %899 = vmatpush.bf16.msra.mxu0 %v598
  %900 = vmatpush.bf16.msra.mxu0 %v582
  %901 = vmatpush.bf16.msra.mxu0 %v566
  %902 = vmatpush.bf16.msra.mxu0 %v550
  %903 = vmatpush.bf16.msra.mxu0 %v534
  %904 = vmatpush.bf16.msra.mxu0 %v518
  %905 = vmatpush.bf16.msra.mxu0 %v502
  %906 = vmatmul.bf16.gmra.mxu0 %v714
  %v907 = vpop.f32.mrf.mxu0
  %v908 = vadd.f32 %v150, %v907
  %v909 = vpop.f32.mrf.mxu0
  %910 = vdwg.mxu0
  %911 = vmatpush.bf16.msra.mxu0 0
  %912 = vmatpush.bf16.msra.mxu0 %v599
  %913 = vmatpush.bf16.msra.mxu0 %v583
  %914 = vmatpush.bf16.msra.mxu0 %v567
  %915 = vmatpush.bf16.msra.mxu0 %v551
  %916 = vmatpush.bf16.msra.mxu0 %v535
  %917 = vmatpush.bf16.msra.mxu0 %v519
  %918 = vmatpush.bf16.msra.mxu0 %v503
  %919 = vmatmul.bf16.gmra.mxu0 %v714
  %v920 = vpop.f32.mrf.mxu0
  %v921 = vadd.f32 %v150, %v920
  %v922 = vpop.f32.mrf.mxu0
  %923 = vdwg.mxu0
  %v924 = vmax.f32 %v726, 0.0
  %v925 = vmax.f32 %v739, 0.0
  %v926 = vmax.f32 %v752, 0.0
  %v927 = vmax.f32 %v765, 0.0
  %v928 = vmax.f32 %v778, 0.0
  %v929 = vmax.f32 %v791, 0.0
  %v930 = vmax.f32 %v804, 0.0
  %v931 = vmax.f32 %v817, 0.0
  %v932 = vmax.f32 %v830, 0.0
  %v933 = vmax.f32 %v843, 0.0
  %v934 = vmax.f32 %v856, 0.0
  %v935 = vmax.f32 %v869, 0.0
  %v936 = vmax.f32 %v882, 0.0
  %v937 = vmax.f32 %v895, 0.0
  %v938 = vmax.f32 %v908, 0.0
  %v939 = vmax.f32 %v921, 0.0
  %940 = vrot.lane.b32.xlu0 %v924, 33
  %v941 = vpop.permute.xlu0 %940
  %942 = vrot.lane.b32.xlu0 %v925, 33
  %v943 = vpop.permute.xlu0 %942
  %944 = vrot.lane.b32.xlu0 %v926, 33
  %v945 = vpop.permute.xlu0 %944
  %946 = vrot.lane.b32.xlu0 %v927, 33
  %v947 = vpop.permute.xlu0 %946
  %948 = vrot.lane.b32.xlu0 %v928, 33
  %v949 = vpop.permute.xlu0 %948
  %950 = vrot.lane.b32.xlu0 %v929, 33
  %v951 = vpop.permute.xlu0 %950
  %952 = vrot.lane.b32.xlu0 %v930, 33
  %v953 = vpop.permute.xlu0 %952
  %954 = vrot.lane.b32.xlu0 %v931, 33
  %v955 = vpop.permute.xlu0 %954
  %956 = vrot.lane.b32.xlu0 %v932, 33
  %v957 = vpop.permute.xlu0 %956
  %958 = vrot.lane.b32.xlu0 %v933, 33
  %v959 = vpop.permute.xlu0 %958
  %960 = vrot.lane.b32.xlu0 %v934, 33
  %v961 = vpop.permute.xlu0 %960
  %962 = vrot.lane.b32.xlu0 %v935, 33
  %v963 = vpop.permute.xlu0 %962
  %964 = vrot.lane.b32.xlu0 %v936, 33
  %v965 = vpop.permute.xlu0 %964
  %966 = vrot.lane.b32.xlu0 %v937, 33
  %v967 = vpop.permute.xlu0 %966
  %968 = vrot.lane.b32.xlu0 %v938, 33
  %v969 = vpop.permute.xlu0 %968
  %970 = vrot.lane.b32.xlu0 %v939, 33
  %v971 = vpop.permute.xlu0 %970
  %v972 = vlaneseq
  %v973 = vand.u32 %v972, 127
  %vm974 = vcmp.lt.s32.totalorder %v973, 33
  %v975 = vsel %vm974, %v969, %v971
  %v976 = vsel %vm974, %v967, %v969
  %v977 = vsel %vm974, %v965, %v967
  %v978 = vsel %vm974, %v963, %v965
  %v979 = vsel %vm974, %v961, %v963
  %v980 = vsel %vm974, %v959, %v961
  %v981 = vsel %vm974, %v957, %v959
  %v982 = vsel %vm974, %v955, %v957
  %v983 = vsel %vm974, %v953, %v955
  %v984 = vsel %vm974, %v951, %v953
  %v985 = vsel %vm974, %v949, %v951
  %v986 = vsel %vm974, %v947, %v949
  %v987 = vsel %vm974, %v945, %v947
  %v988 = vsel %vm974, %v943, %v945
  %v989 = vsel %vm974, %v941, %v943
  %v990 = vsel %vm974, %v971, %v941
  %v991 = vld [vmem:[%s8] ss:$8 sm:$0xf]
  %v992 = vld [vmem:[%s8] ss:$8 sm:$0xf0]
  %v993 = vor.u32 %v991, %v992
  %s994 = scalar_lea.vmem %s8, 64
  %v995 = vld [vmem:[%s994] ss:$8 sm:$0xf]
  %v996 = vld [vmem:[%s994] ss:$8 sm:$0xf0]
  %v997 = vor.u32 %v995, %v996
  %v1000 = vperm.slane %v993, 0
  %v1001 = vperm.slane %v993, 1
  %v1002 = vperm.slane %v993, 2
  %v1003 = vperm.slane %v993, 3
  %v1004 = vperm.slane %v993, 4
  %v1005 = vperm.slane %v993, 5
  %v1006 = vperm.slane %v993, 6
  %v1007 = vperm.slane %v993, 7
  %v1008 = vperm.slane %v997, 0
  %v1009 = vperm.slane %v997, 1
  %v1010 = vperm.slane %v997, 2
  %v1011 = vperm.slane %v997, 3
  %v1012 = vperm.slane %v997, 4
  %v1013 = vperm.slane %v997, 5
  %v1014 = vperm.slane %v997, 6
  %v1015 = vperm.slane %v997, 7
  %v1032 = vmul.f32 %v990, %v1000
  %v1033 = vmul.f32 %v989, %v1001
  %v1034 = vmul.f32 %v988, %v1002
  %v1035 = vmul.f32 %v987, %v1003
  %v1036 = vmul.f32 %v986, %v1004
  %v1037 = vmul.f32 %v985, %v1005
  %v1038 = vmul.f32 %v984, %v1006
  %v1039 = vmul.f32 %v983, %v1007
  %v1040 = vmul.f32 %v982, %v1008
  %v1041 = vmul.f32 %v981, %v1009
  %v1042 = vmul.f32 %v980, %v1010
  %v1043 = vmul.f32 %v979, %v1011
  %v1044 = vmul.f32 %v978, %v1012
  %v1045 = vmul.f32 %v977, %v1013
  %v1046 = vmul.f32 %v976, %v1014
  %v1047 = vmul.f32 %v975, %v1015
  %1048 = vrot.lane.b32.xlu0 %v924, 32
  %v1049 = vpop.permute.xlu0 %1048
  %1050 = vrot.lane.b32.xlu0 %v925, 32
  %v1051 = vpop.permute.xlu0 %1050
  %1052 = vrot.lane.b32.xlu0 %v926, 32
  %v1053 = vpop.permute.xlu0 %1052
  %1054 = vrot.lane.b32.xlu0 %v927, 32
  %v1055 = vpop.permute.xlu0 %1054
  %1056 = vrot.lane.b32.xlu0 %v928, 32
  %v1057 = vpop.permute.xlu0 %1056
  %1058 = vrot.lane.b32.xlu0 %v929, 32
  %v1059 = vpop.permute.xlu0 %1058
  %1060 = vrot.lane.b32.xlu0 %v930, 32
  %v1061 = vpop.permute.xlu0 %1060
  %1062 = vrot.lane.b32.xlu0 %v931, 32
  %v1063 = vpop.permute.xlu0 %1062
  %1064 = vrot.lane.b32.xlu0 %v932, 32
  %v1065 = vpop.permute.xlu0 %1064
  %1066 = vrot.lane.b32.xlu0 %v933, 32
  %v1067 = vpop.permute.xlu0 %1066
  %1068 = vrot.lane.b32.xlu0 %v934, 32
  %v1069 = vpop.permute.xlu0 %1068
  %1070 = vrot.lane.b32.xlu0 %v935, 32
  %v1071 = vpop.permute.xlu0 %1070
  %1072 = vrot.lane.b32.xlu0 %v936, 32
  %v1073 = vpop.permute.xlu0 %1072
  %1074 = vrot.lane.b32.xlu0 %v937, 32
  %v1075 = vpop.permute.xlu0 %1074
  %1076 = vrot.lane.b32.xlu0 %v938, 32
  %v1077 = vpop.permute.xlu0 %1076
  %1078 = vrot.lane.b32.xlu0 %v939, 32
  %v1079 = vpop.permute.xlu0 %1078
  %vm1080 = vcmp.lt.s32.totalorder %v973, 32
  %v1081 = vsel %vm1080, %v1077, %v1079
  %v1082 = vsel %vm1080, %v1075, %v1077
  %v1083 = vsel %vm1080, %v1073, %v1075
  %v1084 = vsel %vm1080, %v1071, %v1073
  %v1085 = vsel %vm1080, %v1069, %v1071
  %v1086 = vsel %vm1080, %v1067, %v1069
  %v1087 = vsel %vm1080, %v1065, %v1067
  %v1088 = vsel %vm1080, %v1063, %v1065
  %v1089 = vsel %vm1080, %v1061, %v1063
  %v1090 = vsel %vm1080, %v1059, %v1061
  %v1091 = vsel %vm1080, %v1057, %v1059
  %v1092 = vsel %vm1080, %v1055, %v1057
  %v1093 = vsel %vm1080, %v1053, %v1055
  %v1094 = vsel %vm1080, %v1051, %v1053
  %v1095 = vsel %vm1080, %v1049, %v1051
  %v1096 = vsel %vm1080, %v1079, %v1049
  %s1097 = scalar_lea.vmem %s8, 1
  %v1098 = vld [vmem:[%s1097] ss:$8 sm:$0xf]
  %v1099 = vld [vmem:[%s1097] ss:$8 sm:$0xf0]
  %v1100 = vor.u32 %v1098, %v1099
  %s1101 = scalar_lea.vmem %s8, 65
  %v1102 = vld [vmem:[%s1101] ss:$8 sm:$0xf]
  %v1103 = vld [vmem:[%s1101] ss:$8 sm:$0xf0]
  %v1104 = vor.u32 %v1102, %v1103
  %v1107 = vperm.slane %v1100, 0
  %v1108 = vperm.slane %v1100, 1
  %v1109 = vperm.slane %v1100, 2
  %v1110 = vperm.slane %v1100, 3
  %v1111 = vperm.slane %v1100, 4
  %v1112 = vperm.slane %v1100, 5
  %v1113 = vperm.slane %v1100, 6
  %v1114 = vperm.slane %v1100, 7
  %v1115 = vperm.slane %v1104, 0
  %v1116 = vperm.slane %v1104, 1
  %v1117 = vperm.slane %v1104, 2
  %v1118 = vperm.slane %v1104, 3
  %v1119 = vperm.slane %v1104, 4
  %v1120 = vperm.slane %v1104, 5
  %v1121 = vperm.slane %v1104, 6
  %v1122 = vperm.slane %v1104, 7
  %v1139 = vmul.f32 %v1096, %v1107
  %v1140 = vmul.f32 %v1095, %v1108
  %v1141 = vmul.f32 %v1094, %v1109
  %v1142 = vmul.f32 %v1093, %v1110
  %v1143 = vmul.f32 %v1092, %v1111
  %v1144 = vmul.f32 %v1091, %v1112
  %v1145 = vmul.f32 %v1090, %v1113
  %v1146 = vmul.f32 %v1089, %v1114
  %v1147 = vmul.f32 %v1088, %v1115
  %v1148 = vmul.f32 %v1087, %v1116
  %v1149 = vmul.f32 %v1086, %v1117
  %v1150 = vmul.f32 %v1085, %v1118
  %v1151 = vmul.f32 %v1084, %v1119
  %v1152 = vmul.f32 %v1083, %v1120
  %v1153 = vmul.f32 %v1082, %v1121
  %v1154 = vmul.f32 %v1081, %v1122
  %1155 = vrot.lane.b32.xlu0 %v924, 31
  %v1156 = vpop.permute.xlu0 %1155
  %1157 = vrot.lane.b32.xlu0 %v925, 31
  %v1158 = vpop.permute.xlu0 %1157
  %1159 = vrot.lane.b32.xlu0 %v926, 31
  %v1160 = vpop.permute.xlu0 %1159
  %1161 = vrot.lane.b32.xlu0 %v927, 31
  %v1162 = vpop.permute.xlu0 %1161
  %1163 = vrot.lane.b32.xlu0 %v928, 31
  %v1164 = vpop.permute.xlu0 %1163
  %1165 = vrot.lane.b32.xlu0 %v929, 31
  %v1166 = vpop.permute.xlu0 %1165
  %1167 = vrot.lane.b32.xlu0 %v930, 31
  %v1168 = vpop.permute.xlu0 %1167
  %1169 = vrot.lane.b32.xlu0 %v931, 31
  %v1170 = vpop.permute.xlu0 %1169
  %1171 = vrot.lane.b32.xlu0 %v932, 31
  %v1172 = vpop.permute.xlu0 %1171
  %1173 = vrot.lane.b32.xlu0 %v933, 31
  %v1174 = vpop.permute.xlu0 %1173
  %1175 = vrot.lane.b32.xlu0 %v934, 31
  %v1176 = vpop.permute.xlu0 %1175
  %1177 = vrot.lane.b32.xlu0 %v935, 31
  %v1178 = vpop.permute.xlu0 %1177
  %1179 = vrot.lane.b32.xlu0 %v936, 31
  %v1180 = vpop.permute.xlu0 %1179
  %1181 = vrot.lane.b32.xlu0 %v937, 31
  %v1182 = vpop.permute.xlu0 %1181
  %1183 = vrot.lane.b32.xlu0 %v938, 31
  %v1184 = vpop.permute.xlu0 %1183
  %1185 = vrot.lane.b32.xlu0 %v939, 31
  %v1186 = vpop.permute.xlu0 %1185
  %vm1187 = vcmp.lt.s32.totalorder %v973, 31
  %v1188 = vsel %vm1187, %v1184, %v1186
  %v1189 = vsel %vm1187, %v1182, %v1184
  %v1190 = vsel %vm1187, %v1180, %v1182
  %v1191 = vsel %vm1187, %v1178, %v1180
  %v1192 = vsel %vm1187, %v1176, %v1178
  %v1193 = vsel %vm1187, %v1174, %v1176
  %v1194 = vsel %vm1187, %v1172, %v1174
  %v1195 = vsel %vm1187, %v1170, %v1172
  %v1196 = vsel %vm1187, %v1168, %v1170
  %v1197 = vsel %vm1187, %v1166, %v1168
  %v1198 = vsel %vm1187, %v1164, %v1166
  %v1199 = vsel %vm1187, %v1162, %v1164
  %v1200 = vsel %vm1187, %v1160, %v1162
  %v1201 = vsel %vm1187, %v1158, %v1160
  %v1202 = vsel %vm1187, %v1156, %v1158
  %v1203 = vsel %vm1187, %v1186, %v1156
  %s1204 = scalar_lea.vmem %s8, 2
  %v1205 = vld [vmem:[%s1204] ss:$8 sm:$0xf]
  %v1206 = vld [vmem:[%s1204] ss:$8 sm:$0xf0]
  %v1207 = vor.u32 %v1205, %v1206
  %s1208 = scalar_lea.vmem %s8, 66
  %v1209 = vld [vmem:[%s1208] ss:$8 sm:$0xf]
  %v1210 = vld [vmem:[%s1208] ss:$8 sm:$0xf0]
  %v1211 = vor.u32 %v1209, %v1210
  %v1214 = vperm.slane %v1207, 0
  %v1215 = vperm.slane %v1207, 1
  %v1216 = vperm.slane %v1207, 2
  %v1217 = vperm.slane %v1207, 3
  %v1218 = vperm.slane %v1207, 4
  %v1219 = vperm.slane %v1207, 5
  %v1220 = vperm.slane %v1207, 6
  %v1221 = vperm.slane %v1207, 7
  %v1222 = vperm.slane %v1211, 0
  %v1223 = vperm.slane %v1211, 1
  %v1224 = vperm.slane %v1211, 2
  %v1225 = vperm.slane %v1211, 3
  %v1226 = vperm.slane %v1211, 4
  %v1227 = vperm.slane %v1211, 5
  %v1228 = vperm.slane %v1211, 6
  %v1229 = vperm.slane %v1211, 7
  %v1246 = vmul.f32 %v1203, %v1214
  %v1247 = vmul.f32 %v1202, %v1215
  %v1248 = vmul.f32 %v1201, %v1216
  %v1249 = vmul.f32 %v1200, %v1217
  %v1250 = vmul.f32 %v1199, %v1218
  %v1251 = vmul.f32 %v1198, %v1219
  %v1252 = vmul.f32 %v1197, %v1220
  %v1253 = vmul.f32 %v1196, %v1221
  %v1254 = vmul.f32 %v1195, %v1222
  %v1255 = vmul.f32 %v1194, %v1223
  %v1256 = vmul.f32 %v1193, %v1224
  %v1257 = vmul.f32 %v1192, %v1225
  %v1258 = vmul.f32 %v1191, %v1226
  %v1259 = vmul.f32 %v1190, %v1227
  %v1260 = vmul.f32 %v1189, %v1228
  %v1261 = vmul.f32 %v1188, %v1229
  %1262 = vrot.lane.b32.xlu0 %v924, 1
  %v1263 = vpop.permute.xlu0 %1262
  %1264 = vrot.lane.b32.xlu0 %v925, 1
  %v1265 = vpop.permute.xlu0 %1264
  %1266 = vrot.lane.b32.xlu0 %v926, 1
  %v1267 = vpop.permute.xlu0 %1266
  %1268 = vrot.lane.b32.xlu0 %v927, 1
  %v1269 = vpop.permute.xlu0 %1268
  %1270 = vrot.lane.b32.xlu0 %v928, 1
  %v1271 = vpop.permute.xlu0 %1270
  %1272 = vrot.lane.b32.xlu0 %v929, 1
  %v1273 = vpop.permute.xlu0 %1272
  %1274 = vrot.lane.b32.xlu0 %v930, 1
  %v1275 = vpop.permute.xlu0 %1274
  %1276 = vrot.lane.b32.xlu0 %v931, 1
  %v1277 = vpop.permute.xlu0 %1276
  %1278 = vrot.lane.b32.xlu0 %v932, 1
  %v1279 = vpop.permute.xlu0 %1278
  %1280 = vrot.lane.b32.xlu0 %v933, 1
  %v1281 = vpop.permute.xlu0 %1280
  %1282 = vrot.lane.b32.xlu0 %v934, 1
  %v1283 = vpop.permute.xlu0 %1282
  %1284 = vrot.lane.b32.xlu0 %v935, 1
  %v1285 = vpop.permute.xlu0 %1284
  %1286 = vrot.lane.b32.xlu0 %v936, 1
  %v1287 = vpop.permute.xlu0 %1286
  %1288 = vrot.lane.b32.xlu0 %v937, 1
  %v1289 = vpop.permute.xlu0 %1288
  %1290 = vrot.lane.b32.xlu0 %v938, 1
  %v1291 = vpop.permute.xlu0 %1290
  %1292 = vrot.lane.b32.xlu0 %v939, 1
  %v1293 = vpop.permute.xlu0 %1292
  %vm1294 = vcmp.lt.s32.totalorder %v973, 1
  %v1295 = vsel %vm1294, %v1291, %v1293
  %v1296 = vsel %vm1294, %v1289, %v1291
  %v1297 = vsel %vm1294, %v1287, %v1289
  %v1298 = vsel %vm1294, %v1285, %v1287
  %v1299 = vsel %vm1294, %v1283, %v1285
  %v1300 = vsel %vm1294, %v1281, %v1283
  %v1301 = vsel %vm1294, %v1279, %v1281
  %v1302 = vsel %vm1294, %v1277, %v1279
  %v1303 = vsel %vm1294, %v1275, %v1277
  %v1304 = vsel %vm1294, %v1273, %v1275
  %v1305 = vsel %vm1294, %v1271, %v1273
  %v1306 = vsel %vm1294, %v1269, %v1271
  %v1307 = vsel %vm1294, %v1267, %v1269
  %v1308 = vsel %vm1294, %v1265, %v1267
  %v1309 = vsel %vm1294, %v1263, %v1265
  %v1310 = vsel %vm1294, %v1293, %v1263
  %s1311 = scalar_lea.vmem %s8, 3
  %v1312 = vld [vmem:[%s1311] ss:$8 sm:$0xf]
  %v1313 = vld [vmem:[%s1311] ss:$8 sm:$0xf0]
  %v1314 = vor.u32 %v1312, %v1313
  %s1315 = scalar_lea.vmem %s8, 67
  %v1316 = vld [vmem:[%s1315] ss:$8 sm:$0xf]
  %v1317 = vld [vmem:[%s1315] ss:$8 sm:$0xf0]
  %v1318 = vor.u32 %v1316, %v1317
  %v1321 = vperm.slane %v1314, 0
  %v1322 = vperm.slane %v1314, 1
  %v1323 = vperm.slane %v1314, 2
  %v1324 = vperm.slane %v1314, 3
  %v1325 = vperm.slane %v1314, 4
  %v1326 = vperm.slane %v1314, 5
  %v1327 = vperm.slane %v1314, 6
  %v1328 = vperm.slane %v1314, 7
  %v1329 = vperm.slane %v1318, 0
  %v1330 = vperm.slane %v1318, 1
  %v1331 = vperm.slane %v1318, 2
  %v1332 = vperm.slane %v1318, 3
  %v1333 = vperm.slane %v1318, 4
  %v1334 = vperm.slane %v1318, 5
  %v1335 = vperm.slane %v1318, 6
  %v1336 = vperm.slane %v1318, 7
  %v1353 = vmul.f32 %v1310, %v1321
  %v1354 = vmul.f32 %v1309, %v1322
  %v1355 = vmul.f32 %v1308, %v1323
  %v1356 = vmul.f32 %v1307, %v1324
  %v1357 = vmul.f32 %v1306, %v1325
  %v1358 = vmul.f32 %v1305, %v1326
  %v1359 = vmul.f32 %v1304, %v1327
  %v1360 = vmul.f32 %v1303, %v1328
  %v1361 = vmul.f32 %v1302, %v1329
  %v1362 = vmul.f32 %v1301, %v1330
  %v1363 = vmul.f32 %v1300, %v1331
  %v1364 = vmul.f32 %v1299, %v1332
  %v1365 = vmul.f32 %v1298, %v1333
  %v1366 = vmul.f32 %v1297, %v1334
  %v1367 = vmul.f32 %v1296, %v1335
  %v1368 = vmul.f32 %v1295, %v1336
  %s1369 = scalar_lea.vmem %s8, 4
  %v1370 = vld [vmem:[%s1369] ss:$8 sm:$0xf]
  %v1371 = vld [vmem:[%s1369] ss:$8 sm:$0xf0]
  %v1372 = vor.u32 %v1370, %v1371
  %s1373 = scalar_lea.vmem %s8, 68
  %v1374 = vld [vmem:[%s1373] ss:$8 sm:$0xf]
  %v1375 = vld [vmem:[%s1373] ss:$8 sm:$0xf0]
  %v1376 = vor.u32 %v1374, %v1375
  %v1379 = vperm.slane %v1372, 0
  %v1380 = vperm.slane %v1372, 1
  %v1381 = vperm.slane %v1372, 2
  %v1382 = vperm.slane %v1372, 3
  %v1383 = vperm.slane %v1372, 4
  %v1384 = vperm.slane %v1372, 5
  %v1385 = vperm.slane %v1372, 6
  %v1386 = vperm.slane %v1372, 7
  %v1387 = vperm.slane %v1376, 0
  %v1388 = vperm.slane %v1376, 1
  %v1389 = vperm.slane %v1376, 2
  %v1390 = vperm.slane %v1376, 3
  %v1391 = vperm.slane %v1376, 4
  %v1392 = vperm.slane %v1376, 5
  %v1393 = vperm.slane %v1376, 6
  %v1394 = vperm.slane %v1376, 7
  %v1411 = vmul.f32 %v924, %v1379
  %v1412 = vmul.f32 %v925, %v1380
  %v1413 = vmul.f32 %v926, %v1381
  %v1414 = vmul.f32 %v927, %v1382
  %v1415 = vmul.f32 %v928, %v1383
  %v1416 = vmul.f32 %v929, %v1384
  %v1417 = vmul.f32 %v930, %v1385
  %v1418 = vmul.f32 %v931, %v1386
  %v1419 = vmul.f32 %v932, %v1387
  %v1420 = vmul.f32 %v933, %v1388
  %v1421 = vmul.f32 %v934, %v1389
  %v1422 = vmul.f32 %v935, %v1390
  %v1423 = vmul.f32 %v936, %v1391
  %v1424 = vmul.f32 %v937, %v1392
  %v1425 = vmul.f32 %v938, %v1393
  %v1426 = vmul.f32 %v939, %v1394
  %1427 = vrot.lane.b32.xlu0 %v924, 127
  %v1428 = vpop.permute.xlu0 %1427
  %1429 = vrot.lane.b32.xlu0 %v925, 127
  %v1430 = vpop.permute.xlu0 %1429
  %1431 = vrot.lane.b32.xlu0 %v926, 127
  %v1432 = vpop.permute.xlu0 %1431
  %1433 = vrot.lane.b32.xlu0 %v927, 127
  %v1434 = vpop.permute.xlu0 %1433
  %1435 = vrot.lane.b32.xlu0 %v928, 127
  %v1436 = vpop.permute.xlu0 %1435
  %1437 = vrot.lane.b32.xlu0 %v929, 127
  %v1438 = vpop.permute.xlu0 %1437
  %1439 = vrot.lane.b32.xlu0 %v930, 127
  %v1440 = vpop.permute.xlu0 %1439
  %1441 = vrot.lane.b32.xlu0 %v931, 127
  %v1442 = vpop.permute.xlu0 %1441
  %1443 = vrot.lane.b32.xlu0 %v932, 127
  %v1444 = vpop.permute.xlu0 %1443
  %1445 = vrot.lane.b32.xlu0 %v933, 127
  %v1446 = vpop.permute.xlu0 %1445
  %1447 = vrot.lane.b32.xlu0 %v934, 127
  %v1448 = vpop.permute.xlu0 %1447
  %1449 = vrot.lane.b32.xlu0 %v935, 127
  %v1450 = vpop.permute.xlu0 %1449
  %1451 = vrot.lane.b32.xlu0 %v936, 127
  %v1452 = vpop.permute.xlu0 %1451
  %1453 = vrot.lane.b32.xlu0 %v937, 127
  %v1454 = vpop.permute.xlu0 %1453
  %1455 = vrot.lane.b32.xlu0 %v938, 127
  %v1456 = vpop.permute.xlu0 %1455
  %1457 = vrot.lane.b32.xlu0 %v939, 127
  %v1458 = vpop.permute.xlu0 %1457
  %vm1459 = vcmp.lt.s32.totalorder %v973, 127
  %v1460 = vsel %vm1459, %v1456, %v1458
  %v1461 = vsel %vm1459, %v1454, %v1456
  %v1462 = vsel %vm1459, %v1452, %v1454
  %v1463 = vsel %vm1459, %v1450, %v1452
  %v1464 = vsel %vm1459, %v1448, %v1450
  %v1465 = vsel %vm1459, %v1446, %v1448
  %v1466 = vsel %vm1459, %v1444, %v1446
  %v1467 = vsel %vm1459, %v1442, %v1444
  %v1468 = vsel %vm1459, %v1440, %v1442
  %v1469 = vsel %vm1459, %v1438, %v1440
  %v1470 = vsel %vm1459, %v1436, %v1438
  %v1471 = vsel %vm1459, %v1434, %v1436
  %v1472 = vsel %vm1459, %v1432, %v1434
  %v1473 = vsel %vm1459, %v1430, %v1432
  %v1474 = vsel %vm1459, %v1428, %v1430
  %v1475 = vsel %vm1459, %v1458, %v1428
  %s1476 = scalar_lea.vmem %s8, 5
  %v1477 = vld [vmem:[%s1476] ss:$8 sm:$0xf]
  %v1478 = vld [vmem:[%s1476] ss:$8 sm:$0xf0]
  %v1479 = vor.u32 %v1477, %v1478
  %s1480 = scalar_lea.vmem %s8, 69
  %v1481 = vld [vmem:[%s1480] ss:$8 sm:$0xf]
  %v1482 = vld [vmem:[%s1480] ss:$8 sm:$0xf0]
  %v1483 = vor.u32 %v1481, %v1482
  %v1486 = vperm.slane %v1479, 0
  %v1487 = vperm.slane %v1479, 1
  %v1488 = vperm.slane %v1479, 2
  %v1489 = vperm.slane %v1479, 3
  %v1490 = vperm.slane %v1479, 4
  %v1491 = vperm.slane %v1479, 5
  %v1492 = vperm.slane %v1479, 6
  %v1493 = vperm.slane %v1479, 7
  %v1494 = vperm.slane %v1483, 0
  %v1495 = vperm.slane %v1483, 1
  %v1496 = vperm.slane %v1483, 2
  %v1497 = vperm.slane %v1483, 3
  %v1498 = vperm.slane %v1483, 4
  %v1499 = vperm.slane %v1483, 5
  %v1500 = vperm.slane %v1483, 6
  %v1501 = vperm.slane %v1483, 7
  %v1518 = vmul.f32 %v1474, %v1486
  %v1519 = vmul.f32 %v1473, %v1487
  %v1520 = vmul.f32 %v1472, %v1488
  %v1521 = vmul.f32 %v1471, %v1489
  %v1522 = vmul.f32 %v1470, %v1490
  %v1523 = vmul.f32 %v1469, %v1491
  %v1524 = vmul.f32 %v1468, %v1492
  %v1525 = vmul.f32 %v1467, %v1493
  %v1526 = vmul.f32 %v1466, %v1494
  %v1527 = vmul.f32 %v1465, %v1495
  %v1528 = vmul.f32 %v1464, %v1496
  %v1529 = vmul.f32 %v1463, %v1497
  %v1530 = vmul.f32 %v1462, %v1498
  %v1531 = vmul.f32 %v1461, %v1499
  %v1532 = vmul.f32 %v1460, %v1500
  %v1533 = vmul.f32 %v1475, %v1501
  %1534 = vrot.lane.b32.xlu0 %v924, 97
  %v1535 = vpop.permute.xlu0 %1534
  %1536 = vrot.lane.b32.xlu0 %v925, 97
  %v1537 = vpop.permute.xlu0 %1536
  %1538 = vrot.lane.b32.xlu0 %v926, 97
  %v1539 = vpop.permute.xlu0 %1538
  %1540 = vrot.lane.b32.xlu0 %v927, 97
  %v1541 = vpop.permute.xlu0 %1540
  %1542 = vrot.lane.b32.xlu0 %v928, 97
  %v1543 = vpop.permute.xlu0 %1542
  %1544 = vrot.lane.b32.xlu0 %v929, 97
  %v1545 = vpop.permute.xlu0 %1544
  %1546 = vrot.lane.b32.xlu0 %v930, 97
  %v1547 = vpop.permute.xlu0 %1546
  %1548 = vrot.lane.b32.xlu0 %v931, 97
  %v1549 = vpop.permute.xlu0 %1548
  %1550 = vrot.lane.b32.xlu0 %v932, 97
  %v1551 = vpop.permute.xlu0 %1550
  %1552 = vrot.lane.b32.xlu0 %v933, 97
  %v1553 = vpop.permute.xlu0 %1552
  %1554 = vrot.lane.b32.xlu0 %v934, 97
  %v1555 = vpop.permute.xlu0 %1554
  %1556 = vrot.lane.b32.xlu0 %v935, 97
  %v1557 = vpop.permute.xlu0 %1556
  %1558 = vrot.lane.b32.xlu0 %v936, 97
  %v1559 = vpop.permute.xlu0 %1558
  %1560 = vrot.lane.b32.xlu0 %v937, 97
  %v1561 = vpop.permute.xlu0 %1560
  %1562 = vrot.lane.b32.xlu0 %v938, 97
  %v1563 = vpop.permute.xlu0 %1562
  %1564 = vrot.lane.b32.xlu0 %v939, 97
  %v1565 = vpop.permute.xlu0 %1564
  %vm1566 = vcmp.lt.s32.totalorder %v973, 97
  %v1567 = vsel %vm1566, %v1563, %v1565
  %v1568 = vsel %vm1566, %v1561, %v1563
  %v1569 = vsel %vm1566, %v1559, %v1561
  %v1570 = vsel %vm1566, %v1557, %v1559
  %v1571 = vsel %vm1566, %v1555, %v1557
  %v1572 = vsel %vm1566, %v1553, %v1555
  %v1573 = vsel %vm1566, %v1551, %v1553
  %v1574 = vsel %vm1566, %v1549, %v1551
  %v1575 = vsel %vm1566, %v1547, %v1549
  %v1576 = vsel %vm1566, %v1545, %v1547
  %v1577 = vsel %vm1566, %v1543, %v1545
  %v1578 = vsel %vm1566, %v1541, %v1543
  %v1579 = vsel %vm1566, %v1539, %v1541
  %v1580 = vsel %vm1566, %v1537, %v1539
  %v1581 = vsel %vm1566, %v1535, %v1537
  %v1582 = vsel %vm1566, %v1565, %v1535
  %s1583 = scalar_lea.vmem %s8, 6
  %v1584 = vld [vmem:[%s1583] ss:$8 sm:$0xf]
  %v1585 = vld [vmem:[%s1583] ss:$8 sm:$0xf0]
  %v1586 = vor.u32 %v1584, %v1585
  %s1587 = scalar_lea.vmem %s8, 70
  %v1588 = vld [vmem:[%s1587] ss:$8 sm:$0xf]
  %v1589 = vld [vmem:[%s1587] ss:$8 sm:$0xf0]
  %v1590 = vor.u32 %v1588, %v1589
  %v1593 = vperm.slane %v1586, 0
  %v1594 = vperm.slane %v1586, 1
  %v1595 = vperm.slane %v1586, 2
  %v1596 = vperm.slane %v1586, 3
  %v1597 = vperm.slane %v1586, 4
  %v1598 = vperm.slane %v1586, 5
  %v1599 = vperm.slane %v1586, 6
  %v1600 = vperm.slane %v1586, 7
  %v1601 = vperm.slane %v1590, 0
  %v1602 = vperm.slane %v1590, 1
  %v1603 = vperm.slane %v1590, 2
  %v1604 = vperm.slane %v1590, 3
  %v1605 = vperm.slane %v1590, 4
  %v1606 = vperm.slane %v1590, 5
  %v1607 = vperm.slane %v1590, 6
  %v1608 = vperm.slane %v1590, 7
  %v1625 = vmul.f32 %v1581, %v1593
  %v1626 = vmul.f32 %v1580, %v1594
  %v1627 = vmul.f32 %v1579, %v1595
  %v1628 = vmul.f32 %v1578, %v1596
  %v1629 = vmul.f32 %v1577, %v1597
  %v1630 = vmul.f32 %v1576, %v1598
  %v1631 = vmul.f32 %v1575, %v1599
  %v1632 = vmul.f32 %v1574, %v1600
  %v1633 = vmul.f32 %v1573, %v1601
  %v1634 = vmul.f32 %v1572, %v1602
  %v1635 = vmul.f32 %v1571, %v1603
  %v1636 = vmul.f32 %v1570, %v1604
  %v1637 = vmul.f32 %v1569, %v1605
  %v1638 = vmul.f32 %v1568, %v1606
  %v1639 = vmul.f32 %v1567, %v1607
  %v1640 = vmul.f32 %v1582, %v1608
  %1641 = vrot.lane.b32.xlu0 %v924, 96
  %v1642 = vpop.permute.xlu0 %1641
  %1643 = vrot.lane.b32.xlu0 %v925, 96
  %v1644 = vpop.permute.xlu0 %1643
  %1645 = vrot.lane.b32.xlu0 %v926, 96
  %v1646 = vpop.permute.xlu0 %1645
  %1647 = vrot.lane.b32.xlu0 %v927, 96
  %v1648 = vpop.permute.xlu0 %1647
  %1649 = vrot.lane.b32.xlu0 %v928, 96
  %v1650 = vpop.permute.xlu0 %1649
  %1651 = vrot.lane.b32.xlu0 %v929, 96
  %v1652 = vpop.permute.xlu0 %1651
  %1653 = vrot.lane.b32.xlu0 %v930, 96
  %v1654 = vpop.permute.xlu0 %1653
  %1655 = vrot.lane.b32.xlu0 %v931, 96
  %v1656 = vpop.permute.xlu0 %1655
  %1657 = vrot.lane.b32.xlu0 %v932, 96
  %v1658 = vpop.permute.xlu0 %1657
  %1659 = vrot.lane.b32.xlu0 %v933, 96
  %v1660 = vpop.permute.xlu0 %1659
  %1661 = vrot.lane.b32.xlu0 %v934, 96
  %v1662 = vpop.permute.xlu0 %1661
  %1663 = vrot.lane.b32.xlu0 %v935, 96
  %v1664 = vpop.permute.xlu0 %1663
  %1665 = vrot.lane.b32.xlu0 %v936, 96
  %v1666 = vpop.permute.xlu0 %1665
  %1667 = vrot.lane.b32.xlu0 %v937, 96
  %v1668 = vpop.permute.xlu0 %1667
  %1669 = vrot.lane.b32.xlu0 %v938, 96
  %v1670 = vpop.permute.xlu0 %1669
  %1671 = vrot.lane.b32.xlu0 %v939, 96
  %v1672 = vpop.permute.xlu0 %1671
  %vm1673 = vcmp.lt.s32.totalorder %v973, 96
  %v1674 = vsel %vm1673, %v1670, %v1672
  %v1675 = vsel %vm1673, %v1668, %v1670
  %v1676 = vsel %vm1673, %v1666, %v1668
  %v1677 = vsel %vm1673, %v1664, %v1666
  %v1678 = vsel %vm1673, %v1662, %v1664
  %v1679 = vsel %vm1673, %v1660, %v1662
  %v1680 = vsel %vm1673, %v1658, %v1660
  %v1681 = vsel %vm1673, %v1656, %v1658
  %v1682 = vsel %vm1673, %v1654, %v1656
  %v1683 = vsel %vm1673, %v1652, %v1654
  %v1684 = vsel %vm1673, %v1650, %v1652
  %v1685 = vsel %vm1673, %v1648, %v1650
  %v1686 = vsel %vm1673, %v1646, %v1648
  %v1687 = vsel %vm1673, %v1644, %v1646
  %v1688 = vsel %vm1673, %v1642, %v1644
  %v1689 = vsel %vm1673, %v1672, %v1642
  %s1690 = scalar_lea.vmem %s8, 7
  %v1691 = vld [vmem:[%s1690] ss:$8 sm:$0xf]
  %v1692 = vld [vmem:[%s1690] ss:$8 sm:$0xf0]
  %v1693 = vor.u32 %v1691, %v1692
  %s1694 = scalar_lea.vmem %s8, 71
  %v1695 = vld [vmem:[%s1694] ss:$8 sm:$0xf]
  %v1696 = vld [vmem:[%s1694] ss:$8 sm:$0xf0]
  %v1697 = vor.u32 %v1695, %v1696
  %v1700 = vperm.slane %v1693, 0
  %v1701 = vperm.slane %v1693, 1
  %v1702 = vperm.slane %v1693, 2
  %v1703 = vperm.slane %v1693, 3
  %v1704 = vperm.slane %v1693, 4
  %v1705 = vperm.slane %v1693, 5
  %v1706 = vperm.slane %v1693, 6
  %v1707 = vperm.slane %v1693, 7
  %v1708 = vperm.slane %v1697, 0
  %v1709 = vperm.slane %v1697, 1
  %v1710 = vperm.slane %v1697, 2
  %v1711 = vperm.slane %v1697, 3
  %v1712 = vperm.slane %v1697, 4
  %v1713 = vperm.slane %v1697, 5
  %v1714 = vperm.slane %v1697, 6
  %v1715 = vperm.slane %v1697, 7
  %v1732 = vmul.f32 %v1688, %v1700
  %v1733 = vmul.f32 %v1687, %v1701
  %v1734 = vmul.f32 %v1686, %v1702
  %v1735 = vmul.f32 %v1685, %v1703
  %v1736 = vmul.f32 %v1684, %v1704
  %v1737 = vmul.f32 %v1683, %v1705
  %v1738 = vmul.f32 %v1682, %v1706
  %v1739 = vmul.f32 %v1681, %v1707
  %v1740 = vmul.f32 %v1680, %v1708
  %v1741 = vmul.f32 %v1679, %v1709
  %v1742 = vmul.f32 %v1678, %v1710
  %v1743 = vmul.f32 %v1677, %v1711
  %v1744 = vmul.f32 %v1676, %v1712
  %v1745 = vmul.f32 %v1675, %v1713
  %v1746 = vmul.f32 %v1674, %v1714
  %v1747 = vmul.f32 %v1689, %v1715
  %1748 = vrot.lane.b32.xlu0 %v924, 95
  %v1749 = vpop.permute.xlu0 %1748
  %1750 = vrot.lane.b32.xlu0 %v925, 95
  %v1751 = vpop.permute.xlu0 %1750
  %1752 = vrot.lane.b32.xlu0 %v926, 95
  %v1753 = vpop.permute.xlu0 %1752
  %1754 = vrot.lane.b32.xlu0 %v927, 95
  %v1755 = vpop.permute.xlu0 %1754
  %1756 = vrot.lane.b32.xlu0 %v928, 95
  %v1757 = vpop.permute.xlu0 %1756
  %1758 = vrot.lane.b32.xlu0 %v929, 95
  %v1759 = vpop.permute.xlu0 %1758
  %1760 = vrot.lane.b32.xlu0 %v930, 95
  %v1761 = vpop.permute.xlu0 %1760
  %1762 = vrot.lane.b32.xlu0 %v931, 95
  %v1763 = vpop.permute.xlu0 %1762
  %1764 = vrot.lane.b32.xlu0 %v932, 95
  %v1765 = vpop.permute.xlu0 %1764
  %1766 = vrot.lane.b32.xlu0 %v933, 95
  %v1767 = vpop.permute.xlu0 %1766
  %1768 = vrot.lane.b32.xlu0 %v934, 95
  %v1769 = vpop.permute.xlu0 %1768
  %1770 = vrot.lane.b32.xlu0 %v935, 95
  %v1771 = vpop.permute.xlu0 %1770
  %1772 = vrot.lane.b32.xlu0 %v936, 95
  %v1773 = vpop.permute.xlu0 %1772
  %1774 = vrot.lane.b32.xlu0 %v937, 95
  %v1775 = vpop.permute.xlu0 %1774
  %1776 = vrot.lane.b32.xlu0 %v938, 95
  %v1777 = vpop.permute.xlu0 %1776
  %1778 = vrot.lane.b32.xlu0 %v939, 95
  %v1779 = vpop.permute.xlu0 %1778
  %vm1780 = vcmp.lt.s32.totalorder %v973, 95
  %v1781 = vsel %vm1780, %v1777, %v1779
  %v1782 = vsel %vm1780, %v1775, %v1777
  %v1783 = vsel %vm1780, %v1773, %v1775
  %v1784 = vsel %vm1780, %v1771, %v1773
  %v1785 = vsel %vm1780, %v1769, %v1771
  %v1786 = vsel %vm1780, %v1767, %v1769
  %v1787 = vsel %vm1780, %v1765, %v1767
  %v1788 = vsel %vm1780, %v1763, %v1765
  %v1789 = vsel %vm1780, %v1761, %v1763
  %v1790 = vsel %vm1780, %v1759, %v1761
  %v1791 = vsel %vm1780, %v1757, %v1759
  %v1792 = vsel %vm1780, %v1755, %v1757
  %v1793 = vsel %vm1780, %v1753, %v1755
  %v1794 = vsel %vm1780, %v1751, %v1753
  %v1795 = vsel %vm1780, %v1749, %v1751
  %v1796 = vsel %vm1780, %v1779, %v1749
  %s1797 = scalar_lea.vmem %s8, 128
  %v1798 = vld [vmem:[%s1797] ss:$8 sm:$0xf]
  %v1799 = vld [vmem:[%s1797] ss:$8 sm:$0xf0]
  %v1800 = vor.u32 %v1798, %v1799
  %s1801 = scalar_lea.vmem %s8, 192
  %v1802 = vld [vmem:[%s1801] ss:$8 sm:$0xf]
  %v1803 = vld [vmem:[%s1801] ss:$8 sm:$0xf0]
  %v1804 = vor.u32 %v1802, %v1803
  %v1807 = vperm.slane %v1800, 0
  %v1808 = vperm.slane %v1800, 1
  %v1809 = vperm.slane %v1800, 2
  %v1810 = vperm.slane %v1800, 3
  %v1811 = vperm.slane %v1800, 4
  %v1812 = vperm.slane %v1800, 5
  %v1813 = vperm.slane %v1800, 6
  %v1814 = vperm.slane %v1800, 7
  %v1815 = vperm.slane %v1804, 0
  %v1816 = vperm.slane %v1804, 1
  %v1817 = vperm.slane %v1804, 2
  %v1818 = vperm.slane %v1804, 3
  %v1819 = vperm.slane %v1804, 4
  %v1820 = vperm.slane %v1804, 5
  %v1821 = vperm.slane %v1804, 6
  %v1822 = vperm.slane %v1804, 7
  %v1839 = vmul.f32 %v1795, %v1807
  %v1840 = vmul.f32 %v1794, %v1808
  %v1841 = vmul.f32 %v1793, %v1809
  %v1842 = vmul.f32 %v1792, %v1810
  %v1843 = vmul.f32 %v1791, %v1811
  %v1844 = vmul.f32 %v1790, %v1812
  %v1845 = vmul.f32 %v1789, %v1813
  %v1846 = vmul.f32 %v1788, %v1814
  %v1847 = vmul.f32 %v1787, %v1815
  %v1848 = vmul.f32 %v1786, %v1816
  %v1849 = vmul.f32 %v1785, %v1817
  %v1850 = vmul.f32 %v1784, %v1818
  %v1851 = vmul.f32 %v1783, %v1819
  %v1852 = vmul.f32 %v1782, %v1820
  %v1853 = vmul.f32 %v1781, %v1821
  %v1854 = vmul.f32 %v1796, %v1822
  %v1855 = vpack.c.bf16 %v1139, %v1032
  %v1856 = vpack.c.bf16 %v1140, %v1033
  %v1857 = vpack.c.bf16 %v1141, %v1034
  %v1858 = vpack.c.bf16 %v1142, %v1035
  %v1859 = vpack.c.bf16 %v1143, %v1036
  %v1860 = vpack.c.bf16 %v1144, %v1037
  %v1861 = vpack.c.bf16 %v1145, %v1038
  %v1862 = vpack.c.bf16 %v1146, %v1039
  %v1863 = vpack.c.bf16 %v1147, %v1040
  %v1864 = vpack.c.bf16 %v1148, %v1041
  %v1865 = vpack.c.bf16 %v1149, %v1042
  %v1866 = vpack.c.bf16 %v1150, %v1043
  %v1867 = vpack.c.bf16 %v1151, %v1044
  %v1868 = vpack.c.bf16 %v1152, %v1045
  %v1869 = vpack.c.bf16 %v1153, %v1046
  %v1870 = vpack.c.bf16 %v1154, %v1047
  %v1871 = vpack.c.bf16 %v1353, %v1246
  %v1872 = vpack.c.bf16 %v1354, %v1247
  %v1873 = vpack.c.bf16 %v1355, %v1248
  %v1874 = vpack.c.bf16 %v1356, %v1249
  %v1875 = vpack.c.bf16 %v1357, %v1250
  %v1876 = vpack.c.bf16 %v1358, %v1251
  %v1877 = vpack.c.bf16 %v1359, %v1252
  %v1878 = vpack.c.bf16 %v1360, %v1253
  %v1879 = vpack.c.bf16 %v1361, %v1254
  %v1880 = vpack.c.bf16 %v1362, %v1255
  %v1881 = vpack.c.bf16 %v1363, %v1256
  %v1882 = vpack.c.bf16 %v1364, %v1257
  %v1883 = vpack.c.bf16 %v1365, %v1258
  %v1884 = vpack.c.bf16 %v1366, %v1259
  %v1885 = vpack.c.bf16 %v1367, %v1260
  %v1886 = vpack.c.bf16 %v1368, %v1261
  %v1887 = vpack.c.bf16 %v1518, %v1411
  %v1888 = vpack.c.bf16 %v1519, %v1412
  %v1889 = vpack.c.bf16 %v1520, %v1413
  %v1890 = vpack.c.bf16 %v1521, %v1414
  %v1891 = vpack.c.bf16 %v1522, %v1415
  %v1892 = vpack.c.bf16 %v1523, %v1416
  %v1893 = vpack.c.bf16 %v1524, %v1417
  %v1894 = vpack.c.bf16 %v1525, %v1418
  %v1895 = vpack.c.bf16 %v1526, %v1419
  %v1896 = vpack.c.bf16 %v1527, %v1420
  %v1897 = vpack.c.bf16 %v1528, %v1421
  %v1898 = vpack.c.bf16 %v1529, %v1422
  %v1899 = vpack.c.bf16 %v1530, %v1423
  %v1900 = vpack.c.bf16 %v1531, %v1424
  %v1901 = vpack.c.bf16 %v1532, %v1425
  %v1902 = vpack.c.bf16 %v1533, %v1426
  %v1903 = vpack.c.bf16 %v1732, %v1625
  %v1904 = vpack.c.bf16 %v1733, %v1626
  %v1905 = vpack.c.bf16 %v1734, %v1627
  %v1906 = vpack.c.bf16 %v1735, %v1628
  %v1907 = vpack.c.bf16 %v1736, %v1629
  %v1908 = vpack.c.bf16 %v1737, %v1630
  %v1909 = vpack.c.bf16 %v1738, %v1631
  %v1910 = vpack.c.bf16 %v1739, %v1632
  %v1911 = vpack.c.bf16 %v1740, %v1633
  %v1912 = vpack.c.bf16 %v1741, %v1634
  %v1913 = vpack.c.bf16 %v1742, %v1635
  %v1914 = vpack.c.bf16 %v1743, %v1636
  %v1915 = vpack.c.bf16 %v1744, %v1637
  %v1916 = vpack.c.bf16 %v1745, %v1638
  %v1917 = vpack.c.bf16 %v1746, %v1639
  %v1918 = vpack.c.bf16 %v1747, %v1640
  %v1919 = vpack.c.bf16 %v1839, %v1839
  %v1920 = vpack.c.bf16 %v1840, %v1840
  %v1921 = vpack.c.bf16 %v1841, %v1841
  %v1922 = vpack.c.bf16 %v1842, %v1842
  %v1923 = vpack.c.bf16 %v1843, %v1843
  %v1924 = vpack.c.bf16 %v1844, %v1844
  %v1925 = vpack.c.bf16 %v1845, %v1845
  %v1926 = vpack.c.bf16 %v1846, %v1846
  %v1927 = vpack.c.bf16 %v1847, %v1847
  %v1928 = vpack.c.bf16 %v1848, %v1848
  %v1929 = vpack.c.bf16 %v1849, %v1849
  %v1930 = vpack.c.bf16 %v1850, %v1850
  %v1931 = vpack.c.bf16 %v1851, %v1851
  %v1932 = vpack.c.bf16 %v1852, %v1852
  %v1933 = vpack.c.bf16 %v1853, %v1853
  %v1934 = vpack.c.bf16 %v1854, %v1854
  %v1935 = vld [vmem:[%s3] sm:$0xf]
  %v1936 = vld [vmem:[%s4] sm:$0xff]
  %1938 = vset.pattern.permute.xlu0 0
  %1939 = vperm.xlu0 %1938, %v1936
  %v1940 = vpop.permute.xlu0 %1939
  %vm1942 = vcmask 588800
  %v1944 = vsel %vm1942, %v1935, 0
  %vm1946 = vcmask 1043456
  %v1948 = vsel %vm1946, %v1919, 0
  %v1951 = vsel %vm1946, %v1920, 0
  %v1954 = vsel %vm1946, %v1921, 0
  %v1957 = vsel %vm1946, %v1922, 0
  %v1960 = vsel %vm1946, %v1923, 0
  %v1963 = vsel %vm1946, %v1924, 0
  %v1966 = vsel %vm1946, %v1925, 0
  %v1969 = vsel %vm1946, %v1926, 0
  %v1972 = vsel %vm1946, %v1927, 0
  %v1975 = vsel %vm1946, %v1928, 0
  %v1978 = vsel %vm1946, %v1929, 0
  %v1981 = vsel %vm1946, %v1930, 0
  %v1984 = vsel %vm1946, %v1931, 0
  %v1987 = vsel %vm1946, %v1932, 0
  %v1990 = vsel %vm1946, %v1933, 0
  %v1993 = vsel %vm1946, %v1934, 0
  %1995 = vmatpush.bf16.msra.mxu0 0
  %1996 = vmatpush.bf16.msra.mxu0 0
  %1997 = vmatpush.bf16.msra.mxu0 0
  %1998 = vmatpush.bf16.msra.mxu0 %v1948
  %1999 = vmatpush.bf16.msra.mxu0 %v1903
  %2000 = vmatpush.bf16.msra.mxu0 %v1887
  %2001 = vmatpush.bf16.msra.mxu0 %v1871
  %2002 = vmatpush.bf16.msra.mxu0 %v1855
  %2003 = vmatmul.bf16.gmra.mxu0 %v1944
  %v2004 = vpop.f32.mrf.mxu0
  %v2005 = vadd.f32 %v1940, %v2004
  %v2006 = vpop.f32.mrf.mxu0
  %2007 = vdwg.mxu0
  %2008 = vmatpush.bf16.msra.mxu0 0
  %2009 = vmatpush.bf16.msra.mxu0 0
  %2010 = vmatpush.bf16.msra.mxu0 0
  %2011 = vmatpush.bf16.msra.mxu0 %v1951
  %2012 = vmatpush.bf16.msra.mxu0 %v1904
  %2013 = vmatpush.bf16.msra.mxu0 %v1888
  %2014 = vmatpush.bf16.msra.mxu0 %v1872
  %2015 = vmatpush.bf16.msra.mxu0 %v1856
  %2016 = vmatmul.bf16.gmra.mxu0 %v1944
  %v2017 = vpop.f32.mrf.mxu0
  %v2018 = vadd.f32 %v1940, %v2017
  %v2019 = vpop.f32.mrf.mxu0
  %2020 = vdwg.mxu0
  %2021 = vmatpush.bf16.msra.mxu0 0
  %2022 = vmatpush.bf16.msra.mxu0 0
  %2023 = vmatpush.bf16.msra.mxu0 0
  %2024 = vmatpush.bf16.msra.mxu0 %v1954
  %2025 = vmatpush.bf16.msra.mxu0 %v1905
  %2026 = vmatpush.bf16.msra.mxu0 %v1889
  %2027 = vmatpush.bf16.msra.mxu0 %v1873
  %2028 = vmatpush.bf16.msra.mxu0 %v1857
  %2029 = vmatmul.bf16.gmra.mxu0 %v1944
  %v2030 = vpop.f32.mrf.mxu0
  %v2031 = vadd.f32 %v1940, %v2030
  %v2032 = vpop.f32.mrf.mxu0
  %2033 = vdwg.mxu0
  %2034 = vmatpush.bf16.msra.mxu0 0
  %2035 = vmatpush.bf16.msra.mxu0 0
  %2036 = vmatpush.bf16.msra.mxu0 0
  %2037 = vmatpush.bf16.msra.mxu0 %v1957
  %2038 = vmatpush.bf16.msra.mxu0 %v1906
  %2039 = vmatpush.bf16.msra.mxu0 %v1890
  %2040 = vmatpush.bf16.msra.mxu0 %v1874
  %2041 = vmatpush.bf16.msra.mxu0 %v1858
  %2042 = vmatmul.bf16.gmra.mxu0 %v1944
  %v2043 = vpop.f32.mrf.mxu0
  %v2044 = vadd.f32 %v1940, %v2043
  %v2045 = vpop.f32.mrf.mxu0
  %2046 = vdwg.mxu0
  %2047 = vmatpush.bf16.msra.mxu0 0
  %2048 = vmatpush.bf16.msra.mxu0 0
  %2049 = vmatpush.bf16.msra.mxu0 0
  %2050 = vmatpush.bf16.msra.mxu0 %v1960
  %2051 = vmatpush.bf16.msra.mxu0 %v1907
  %2052 = vmatpush.bf16.msra.mxu0 %v1891
  %2053 = vmatpush.bf16.msra.mxu0 %v1875
  %2054 = vmatpush.bf16.msra.mxu0 %v1859
  %2055 = vmatmul.bf16.gmra.mxu0 %v1944
  %v2056 = vpop.f32.mrf.mxu0
  %v2057 = vadd.f32 %v1940, %v2056
  %v2058 = vpop.f32.mrf.mxu0
  %2059 = vdwg.mxu0
  %2060 = vmatpush.bf16.msra.mxu0 0
  %2061 = vmatpush.bf16.msra.mxu0 0
  %2062 = vmatpush.bf16.msra.mxu0 0
  %2063 = vmatpush.bf16.msra.mxu0 %v1963
  %2064 = vmatpush.bf16.msra.mxu0 %v1908
  %2065 = vmatpush.bf16.msra.mxu0 %v1892
  %2066 = vmatpush.bf16.msra.mxu0 %v1876
  %2067 = vmatpush.bf16.msra.mxu0 %v1860
  %2068 = vmatmul.bf16.gmra.mxu0 %v1944
  %v2069 = vpop.f32.mrf.mxu0
  %v2070 = vadd.f32 %v1940, %v2069
  %v2071 = vpop.f32.mrf.mxu0
  %2072 = vdwg.mxu0
  %2073 = vmatpush.bf16.msra.mxu0 0
  %2074 = vmatpush.bf16.msra.mxu0 0
  %2075 = vmatpush.bf16.msra.mxu0 0
  %2076 = vmatpush.bf16.msra.mxu0 %v1966
  %2077 = vmatpush.bf16.msra.mxu0 %v1909
  %2078 = vmatpush.bf16.msra.mxu0 %v1893
  %2079 = vmatpush.bf16.msra.mxu0 %v1877
  %2080 = vmatpush.bf16.msra.mxu0 %v1861
  %2081 = vmatmul.bf16.gmra.mxu0 %v1944
  %v2082 = vpop.f32.mrf.mxu0
  %v2083 = vadd.f32 %v1940, %v2082
  %v2084 = vpop.f32.mrf.mxu0
  %2085 = vdwg.mxu0
  %2086 = vmatpush.bf16.msra.mxu0 0
  %2087 = vmatpush.bf16.msra.mxu0 0
  %2088 = vmatpush.bf16.msra.mxu0 0
  %2089 = vmatpush.bf16.msra.mxu0 %v1969
  %2090 = vmatpush.bf16.msra.mxu0 %v1910
  %2091 = vmatpush.bf16.msra.mxu0 %v1894
  %2092 = vmatpush.bf16.msra.mxu0 %v1878
  %2093 = vmatpush.bf16.msra.mxu0 %v1862
  %2094 = vmatmul.bf16.gmra.mxu0 %v1944
  %v2095 = vpop.f32.mrf.mxu0
  %v2096 = vadd.f32 %v1940, %v2095
  %v2097 = vpop.f32.mrf.mxu0
  %2098 = vdwg.mxu0
  %2099 = vmatpush.bf16.msra.mxu0 0
  %2100 = vmatpush.bf16.msra.mxu0 0
  %2101 = vmatpush.bf16.msra.mxu0 0
  %2102 = vmatpush.bf16.msra.mxu0 %v1972
  %2103 = vmatpush.bf16.msra.mxu0 %v1911
  %2104 = vmatpush.bf16.msra.mxu0 %v1895
  %2105 = vmatpush.bf16.msra.mxu0 %v1879
  %2106 = vmatpush.bf16.msra.mxu0 %v1863
  %2107 = vmatmul.bf16.gmra.mxu0 %v1944
  %v2108 = vpop.f32.mrf.mxu0
  %v2109 = vadd.f32 %v1940, %v2108
  %v2110 = vpop.f32.mrf.mxu0
  %2111 = vdwg.mxu0
  %2112 = vmatpush.bf16.msra.mxu0 0
  %2113 = vmatpush.bf16.msra.mxu0 0
  %2114 = vmatpush.bf16.msra.mxu0 0
  %2115 = vmatpush.bf16.msra.mxu0 %v1975
  %2116 = vmatpush.bf16.msra.mxu0 %v1912
  %2117 = vmatpush.bf16.msra.mxu0 %v1896
  %2118 = vmatpush.bf16.msra.mxu0 %v1880
  %2119 = vmatpush.bf16.msra.mxu0 %v1864
  %2120 = vmatmul.bf16.gmra.mxu0 %v1944
  %v2121 = vpop.f32.mrf.mxu0
  %v2122 = vadd.f32 %v1940, %v2121
  %v2123 = vpop.f32.mrf.mxu0
  %2124 = vdwg.mxu0
  %2125 = vmatpush.bf16.msra.mxu0 0
  %2126 = vmatpush.bf16.msra.mxu0 0
  %2127 = vmatpush.bf16.msra.mxu0 0
  %2128 = vmatpush.bf16.msra.mxu0 %v1978
  %2129 = vmatpush.bf16.msra.mxu0 %v1913
  %2130 = vmatpush.bf16.msra.mxu0 %v1897
  %2131 = vmatpush.bf16.msra.mxu0 %v1881
  %2132 = vmatpush.bf16.msra.mxu0 %v1865
  %2133 = vmatmul.bf16.gmra.mxu0 %v1944
  %v2134 = vpop.f32.mrf.mxu0
  %v2135 = vadd.f32 %v1940, %v2134
  %v2136 = vpop.f32.mrf.mxu0
  %2137 = vdwg.mxu0
  %2138 = vmatpush.bf16.msra.mxu0 0
  %2139 = vmatpush.bf16.msra.mxu0 0
  %2140 = vmatpush.bf16.msra.mxu0 0
  %2141 = vmatpush.bf16.msra.mxu0 %v1981
  %2142 = vmatpush.bf16.msra.mxu0 %v1914
  %2143 = vmatpush.bf16.msra.mxu0 %v1898
  %2144 = vmatpush.bf16.msra.mxu0 %v1882
  %2145 = vmatpush.bf16.msra.mxu0 %v1866
  %2146 = vmatmul.bf16.gmra.mxu0 %v1944
  %v2147 = vpop.f32.mrf.mxu0
  %v2148 = vadd.f32 %v1940, %v2147
  %v2149 = vpop.f32.mrf.mxu0
  %2150 = vdwg.mxu0
  %2151 = vmatpush.bf16.msra.mxu0 0
  %2152 = vmatpush.bf16.msra.mxu0 0
  %2153 = vmatpush.bf16.msra.mxu0 0
  %2154 = vmatpush.bf16.msra.mxu0 %v1984
  %2155 = vmatpush.bf16.msra.mxu0 %v1915
  %2156 = vmatpush.bf16.msra.mxu0 %v1899
  %2157 = vmatpush.bf16.msra.mxu0 %v1883
  %2158 = vmatpush.bf16.msra.mxu0 %v1867
  %2159 = vmatmul.bf16.gmra.mxu0 %v1944
  %v2160 = vpop.f32.mrf.mxu0
  %v2161 = vadd.f32 %v1940, %v2160
  %v2162 = vpop.f32.mrf.mxu0
  %2163 = vdwg.mxu0
  %2164 = vmatpush.bf16.msra.mxu0 0
  %2165 = vmatpush.bf16.msra.mxu0 0
  %2166 = vmatpush.bf16.msra.mxu0 0
  %2167 = vmatpush.bf16.msra.mxu0 %v1987
  %2168 = vmatpush.bf16.msra.mxu0 %v1916
  %2169 = vmatpush.bf16.msra.mxu0 %v1900
  %2170 = vmatpush.bf16.msra.mxu0 %v1884
  %2171 = vmatpush.bf16.msra.mxu0 %v1868
  %2172 = vmatmul.bf16.gmra.mxu0 %v1944
  %v2173 = vpop.f32.mrf.mxu0
  %v2174 = vadd.f32 %v1940, %v2173
  %v2175 = vpop.f32.mrf.mxu0
  %2176 = vdwg.mxu0
  %2177 = vmatpush.bf16.msra.mxu0 0
  %2178 = vmatpush.bf16.msra.mxu0 0
  %2179 = vmatpush.bf16.msra.mxu0 0
  %2180 = vmatpush.bf16.msra.mxu0 %v1990
  %2181 = vmatpush.bf16.msra.mxu0 %v1917
  %2182 = vmatpush.bf16.msra.mxu0 %v1901
  %2183 = vmatpush.bf16.msra.mxu0 %v1885
  %2184 = vmatpush.bf16.msra.mxu0 %v1869
  %2185 = vmatmul.bf16.gmra.mxu0 %v1944
  %v2186 = vpop.f32.mrf.mxu0
  %v2187 = vadd.f32 %v1940, %v2186
  %v2188 = vpop.f32.mrf.mxu0
  %2189 = vdwg.mxu0
  %2190 = vmatpush.bf16.msra.mxu0 0
  %2191 = vmatpush.bf16.msra.mxu0 0
  %2192 = vmatpush.bf16.msra.mxu0 0
  %2193 = vmatpush.bf16.msra.mxu0 %v1993
  %2194 = vmatpush.bf16.msra.mxu0 %v1918
  %2195 = vmatpush.bf16.msra.mxu0 %v1902
  %2196 = vmatpush.bf16.msra.mxu0 %v1886
  %2197 = vmatpush.bf16.msra.mxu0 %v1870
  %2198 = vmatmul.bf16.gmra.mxu0 %v1944
  %v2199 = vpop.f32.mrf.mxu0
  %v2200 = vadd.f32 %v1940, %v2199
  %v2201 = vpop.f32.mrf.mxu0
  %2202 = vdwg.mxu0
  %v2203 = vadd.f32 %v2005, %v2018
  %v2204 = vadd.f32 %v2203, %v2031
  %v2205 = vadd.f32 %v2204, %v2044
  %v2206 = vadd.f32 %v2205, %v2057
  %v2207 = vadd.f32 %v2206, %v2070
  %v2208 = vadd.f32 %v2207, %v2083
  %v2209 = vadd.f32 %v2208, %v2096
  %v2210 = vadd.f32 %v2209, %v2109
  %v2211 = vadd.f32 %v2210, %v2122
  %v2212 = vadd.f32 %v2211, %v2135
  %v2213 = vadd.f32 %v2212, %v2148
  %v2214 = vadd.f32 %v2213, %v2161
  %v2215 = vadd.f32 %v2214, %v2174
  %v2216 = vadd.f32 %v2215, %v2187
  %v2217 = vadd.f32 %v2216, %v2200
  %2218 = vadd.xlane.f32.xlu0 %v2217
  %v2219 = vpop.xlane.xlu0 %2218
  %v2220 = vmul.f32 %v2219, 0.00048828125
  %v2221 = vsub.f32 %v2005, %v2220
  %v2222 = vsub.f32 %v2018, %v2220
  %v2223 = vsub.f32 %v2031, %v2220
  %v2224 = vsub.f32 %v2044, %v2220
  %v2225 = vsub.f32 %v2057, %v2220
  %v2226 = vsub.f32 %v2070, %v2220
  %v2227 = vsub.f32 %v2083, %v2220
  %v2228 = vsub.f32 %v2096, %v2220
  %v2229 = vsub.f32 %v2109, %v2220
  %v2230 = vsub.f32 %v2122, %v2220
  %v2231 = vsub.f32 %v2135, %v2220
  %v2232 = vsub.f32 %v2148, %v2220
  %v2233 = vsub.f32 %v2161, %v2220
  %v2234 = vsub.f32 %v2174, %v2220
  %v2235 = vsub.f32 %v2187, %v2220
  %v2236 = vsub.f32 %v2200, %v2220
  %v2237 = vmul.f32 %v2221, %v2221
  %v2238 = vmul.f32 %v2222, %v2222
  %v2239 = vmul.f32 %v2223, %v2223
  %v2240 = vmul.f32 %v2224, %v2224
  %v2241 = vmul.f32 %v2225, %v2225
  %v2242 = vmul.f32 %v2226, %v2226
  %v2243 = vmul.f32 %v2227, %v2227
  %v2244 = vmul.f32 %v2228, %v2228
  %v2245 = vmul.f32 %v2229, %v2229
  %v2246 = vmul.f32 %v2230, %v2230
  %v2247 = vmul.f32 %v2231, %v2231
  %v2248 = vmul.f32 %v2232, %v2232
  %v2249 = vmul.f32 %v2233, %v2233
  %v2250 = vmul.f32 %v2234, %v2234
  %v2251 = vmul.f32 %v2235, %v2235
  %v2252 = vmul.f32 %v2236, %v2236
  %v2253 = vadd.f32 %v2237, %v2238
  %v2254 = vadd.f32 %v2253, %v2239
  %v2255 = vadd.f32 %v2254, %v2240
  %v2256 = vadd.f32 %v2255, %v2241
  %v2257 = vadd.f32 %v2256, %v2242
  %v2258 = vadd.f32 %v2257, %v2243
  %v2259 = vadd.f32 %v2258, %v2244
  %v2260 = vadd.f32 %v2259, %v2245
  %v2261 = vadd.f32 %v2260, %v2246
  %v2262 = vadd.f32 %v2261, %v2247
  %v2263 = vadd.f32 %v2262, %v2248
  %v2264 = vadd.f32 %v2263, %v2249
  %v2265 = vadd.f32 %v2264, %v2250
  %v2266 = vadd.f32 %v2265, %v2251
  %v2267 = vadd.f32 %v2266, %v2252
  %2268 = vadd.xlane.f32.xlu0 %v2267
  %v2269 = vpop.xlane.xlu0 %2268
  %v2270 = vmul.f32 %v2269, 0.00048828125
  %v2271 = vld [vmem:[%s5] sm:$0xff]
  %v2272 = vadd.f32 %v2270, 1e-05
  %v2273 = vrsqrt.pop %v2272
  %v2274 = vmul.f32 %v2273, %v2272
  %v2275 = vmul.f32 %v2274, %v2273
  %v2276 = vmul.f32 0.5, %v2275
  %v2277 = vsub.f32 1.5, %v2276
  %v2278 = vmul.f32 %v2273, %v2277
  %vm2279 = vweird.f32 %v2272
  %vm2280 = vweird.f32 %v2273
  %vm2281 = vmor %vm2279, %vm2280
  %v2282 = vsel %vm2281, %v2273, %v2278
  %v2283 = vmul.f32 %v2271, %v2282
  %2285 = vset.pattern.permute.xlu0 0
  %2286 = vperm.xlu0 %2285, %v2283
  %v2287 = vpop.permute.xlu0 %2286
  %v2289 = vmul.f32 %v2221, %v2287
  %v2290 = vmul.f32 %v2222, %v2287
  %v2291 = vmul.f32 %v2223, %v2287
  %v2292 = vmul.f32 %v2224, %v2287
  %v2293 = vmul.f32 %v2225, %v2287
  %v2294 = vmul.f32 %v2226, %v2287
  %v2295 = vmul.f32 %v2227, %v2287
  %v2296 = vmul.f32 %v2228, %v2287
  %v2297 = vmul.f32 %v2229, %v2287
  %v2298 = vmul.f32 %v2230, %v2287
  %v2299 = vmul.f32 %v2231, %v2287
  %v2300 = vmul.f32 %v2232, %v2287
  %v2301 = vmul.f32 %v2233, %v2287
  %v2302 = vmul.f32 %v2234, %v2287
  %v2303 = vmul.f32 %v2235, %v2287
  %v2304 = vmul.f32 %v2236, %v2287
  %v2305 = vld [vmem:[%s6] sm:$0xff]
  %2307 = vset.pattern.permute.xlu0 0
  %2308 = vperm.xlu0 %2307, %v2305
  %v2309 = vpop.permute.xlu0 %2308
  %v2311 = vadd.f32 %v2289, %v2309
  %v2312 = vadd.f32 %v2290, %v2309
  %v2313 = vadd.f32 %v2291, %v2309
  %v2314 = vadd.f32 %v2292, %v2309
  %v2315 = vadd.f32 %v2293, %v2309
  %v2316 = vadd.f32 %v2294, %v2309
  %v2317 = vadd.f32 %v2295, %v2309
  %v2318 = vadd.f32 %v2296, %v2309
  %v2319 = vadd.f32 %v2297, %v2309
  %v2320 = vadd.f32 %v2298, %v2309
  %v2321 = vadd.f32 %v2299, %v2309
  %v2322 = vadd.f32 %v2300, %v2309
  %v2323 = vadd.f32 %v2301, %v2309
  %v2324 = vadd.f32 %v2302, %v2309
  %v2325 = vadd.f32 %v2303, %v2309
  %v2326 = vadd.f32 %v2304, %v2309
  %v2327 = vld [vmem:[%s7] sm:$0xff]
  %v2328 = vld [vmem:[%s7 + $0x8] sm:$0xff]
  %v2329 = vld [vmem:[%s7 + $0x10] sm:$0xff]
  %v2330 = vld [vmem:[%s7 + $0x18] sm:$0xff]
  %v2331 = vld [vmem:[%s7 + $0x20] sm:$0xff]
  %v2332 = vld [vmem:[%s7 + $0x28] sm:$0xff]
  %v2333 = vld [vmem:[%s7 + $0x30] sm:$0xff]
  %v2334 = vld [vmem:[%s7 + $0x38] sm:$0xff]
  %v2335 = vld [vmem:[%s7 + $0x40] sm:$0xff]
  %v2336 = vld [vmem:[%s7 + $0x48] sm:$0xff]
  %v2337 = vld [vmem:[%s7 + $0x50] sm:$0xff]
  %v2338 = vld [vmem:[%s7 + $0x58] sm:$0xff]
  %v2339 = vld [vmem:[%s7 + $0x60] sm:$0xff]
  %v2340 = vld [vmem:[%s7 + $0x68] sm:$0xff]
  %v2341 = vld [vmem:[%s7 + $0x70] sm:$0xff]
  %v2342 = vld [vmem:[%s7 + $0x78] sm:$0xff]
  %v2343 = vadd.f32 %v2311, %v2327
  %v2344 = vadd.f32 %v2312, %v2328
  %v2345 = vadd.f32 %v2313, %v2329
  %v2346 = vadd.f32 %v2314, %v2330
  %v2347 = vadd.f32 %v2315, %v2331
  %v2348 = vadd.f32 %v2316, %v2332
  %v2349 = vadd.f32 %v2317, %v2333
  %v2350 = vadd.f32 %v2318, %v2334
  %v2351 = vadd.f32 %v2319, %v2335
  %v2352 = vadd.f32 %v2320, %v2336
  %v2353 = vadd.f32 %v2321, %v2337
  %v2354 = vadd.f32 %v2322, %v2338
  %v2355 = vadd.f32 %v2323, %v2339
  %v2356 = vadd.f32 %v2324, %v2340
  %v2357 = vadd.f32 %v2325, %v2341
  %v2358 = vadd.f32 %v2326, %v2342
  %v2359 = vmax.f32 %v2343, 0.0
  %v2360 = vmax.f32 %v2344, 0.0
  %v2361 = vmax.f32 %v2345, 0.0
  %v2362 = vmax.f32 %v2346, 0.0
  %v2363 = vmax.f32 %v2347, 0.0
  %v2364 = vmax.f32 %v2348, 0.0
  %v2365 = vmax.f32 %v2349, 0.0
  %v2366 = vmax.f32 %v2350, 0.0
  %v2367 = vmax.f32 %v2351, 0.0
  %v2368 = vmax.f32 %v2352, 0.0
  %v2369 = vmax.f32 %v2353, 0.0
  %v2370 = vmax.f32 %v2354, 0.0
  %v2371 = vmax.f32 %v2355, 0.0
  %v2372 = vmax.f32 %v2356, 0.0
  %v2373 = vmax.f32 %v2357, 0.0
  %v2374 = vmax.f32 %v2358, 0.0
  %2375 = vst [vmem:[%s9] sm:$0xff] %v2359
  %2376 = vst [vmem:[%s9 + $0x8] sm:$0xff] %v2360
  %2377 = vst [vmem:[%s9 + $0x10] sm:$0xff] %v2361
  %2378 = vst [vmem:[%s9 + $0x18] sm:$0xff] %v2362
  %2379 = vst [vmem:[%s9 + $0x20] sm:$0xff] %v2363
  %2380 = vst [vmem:[%s9 + $0x28] sm:$0xff] %v2364
  %2381 = vst [vmem:[%s9 + $0x30] sm:$0xff] %v2365
  %2382 = vst [vmem:[%s9 + $0x38] sm:$0xff] %v2366
  %s2383 = scalar_lea.vmem %s9, 64
  %2384 = vst [vmem:[%s2383] sm:$0xff] %v2367
  %2385 = vst [vmem:[%s2383 + $0x8] sm:$0xff] %v2368
  %2386 = vst [vmem:[%s2383 + $0x10] sm:$0xff] %v2369
  %2387 = vst [vmem:[%s2383 + $0x18] sm:$0xff] %v2370
  %2388 = vst [vmem:[%s2383 + $0x20] sm:$0xff] %v2371
  %2389 = vst [vmem:[%s2383 + $0x28] sm:$0xff] %v2372
  %2390 = vst [vmem:[%s2383 + $0x30] sm:$0xff] %v2373
  %2391 = vst [vmem:[%s2383 + $0x38] sm:$0xff] %v2374
  // Predicated region
  $region38: #{image_upsample_forward.1} parent=0 // pred_check
    _
  $region39: #{image_upsample_forward.1} parent=0 // pred_check_branch
    %2393 = sbr.rel (0) target = $region41
  $region40: #{image_upsample_forward.1} parent=0 // pred_region
    _
  $region41: #{image_upsample_forward.1} parent=0 // pred_fallthru
    _
  // Predicated region
  $region42: #{image_upsample_forward.1} parent=0 // pred_check
    _
  $region43: #{image_upsample_forward.1} parent=0 // pred_check_branch
    %2395 = sbr.rel (0) target = $region45
  $region44: #{image_upsample_forward.1} parent=0 // pred_region
    _
  $region45: #{image_upsample_forward.1} parent=0 // pred_fallthru
    _

</llo_original>
